<compile_context>
chip_gen: v6e
topology: v6e:2x2x1
jax: 0.10.0
libtpu: 0.0.40
codegen_flags: <defaults>
</compile_context>

<pallas_src>
import functools

import jax
import jax.numpy as jnp
import numpy as np
from jax.experimental import pallas as pl
from jax.experimental.pallas import tpu as pltpu


def decoder_kernel(x_ref, wih_ref, whh_ref, b_ref, wfc_ref, bfc_ref,
                   h0_ref, c0_ref,
                   y_ref, hN_ref, cN_ref,
                   xp_sc, hs_sc,
                   *, seq, hidden):
    """Whole sequence in one invocation.  PyTorch gate order (i, f, g, o)."""
    H = hidden
    wih = wih_ref[...]                         # (In, 4H)  bf16
    whh = whh_ref[...]                         # (H, 4H)   bf16
    b = b_ref[...]                             # (1, 4H)   f32  (b_ih + b_hh)

    # ---- Stage 1: input projections for every step, off the serial chain ----
    for t in range(seq):
        xp_sc[t] = jnp.dot(x_ref[t], wih,
                           preferred_element_type=jnp.float32) + b

    # ---- Stage 2: serial recurrence — one MXU matmul per step on the chain --
    def step(t, carry):
        h_prev, c_prev = carry                 # f32 (bs, H)
        gates = xp_sc[t] + jnp.dot(h_prev.astype(jnp.bfloat16), whh,
                                   preferred_element_type=jnp.float32)
        i_g = jax.nn.sigmoid(gates[:, 0 * H:1 * H])
        f_g = jax.nn.sigmoid(gates[:, 1 * H:2 * H])
        g_g = jnp.tanh(gates[:, 2 * H:3 * H])
        o_g = jax.nn.sigmoid(gates[:, 3 * H:4 * H])
        c_new = f_g * c_prev + i_g * g_g
        h_new = o_g * jnp.tanh(c_new)
        hs_sc[t] = h_new                       # keep h_t for the FC head
        return (h_new, c_new)

    h_fin, c_fin = jax.lax.fori_loop(
        0, seq, step, (h0_ref[...], c0_ref[...]), unroll=True)

    hN_ref[...] = h_fin                        # written exactly once
    cN_ref[...] = c_fin

    # ---- Stage 3: FC head, hoisted out of the recurrence --------------------
    wfc = wfc_ref[...]                         # (H, OutP) bf16, lane-padded
    bfc = bfc_ref[...]                         # (1, OutP) f32, lane-padded
    for t in range(seq):
        y_ref[t] = jnp.dot(hs_sc[t].astype(jnp.bfloat16), wfc,
                           preferred_element_type=jnp.float32) + bfc


def decoder_forward(params, x, h0=None):
    """x: (bs, seq, output_size) -> (y, (h, c)) matching the PyTorch Decoder."""
    bs, seq, out_size = x.shape
    hidden = params["w_hh"].shape[1]
    out_p = ((out_size + 127) // 128) * 128    # pad FC output lanes to 128

    if h0 is None:
        h_init = jnp.zeros((bs, hidden), jnp.float32)
        c_init = jnp.zeros((bs, hidden), jnp.float32)
    else:
        h_init = h0[0].reshape(bs, hidden).astype(jnp.float32)
        c_init = h0[1].reshape(bs, hidden).astype(jnp.float32)

    # Weights pre-transposed to (in, out) and cast to bf16 for the MXU.
    wih_t = params["w_ih"].T.astype(jnp.bfloat16)                  # (In, 4H)
    whh_t = params["w_hh"].T.astype(jnp.bfloat16)                  # (H, 4H)
    bias = (params["b_ih"] + params["b_hh"]).reshape(1, 4 * hidden) \
        .astype(jnp.float32)
    wfc_t = params["w_fc"].T.astype(jnp.bfloat16)                  # (H, Out)
    wfc_p = jnp.pad(wfc_t, ((0, 0), (0, out_p - out_size)))        # (H, OutP)
    bfc_p = jnp.pad(params["b_fc"].astype(jnp.float32).reshape(1, out_size),
                    ((0, 0), (0, out_p - out_size)))               # (1, OutP)

    x_tb = jnp.transpose(x, (1, 0, 2)).astype(jnp.bfloat16)        # (seq, bs, In)

    kernel = functools.partial(decoder_kernel, seq=seq, hidden=hidden)
    vmem = pl.BlockSpec(memory_space=pltpu.MemorySpace.VMEM)

    y_pad, h_fin, c_fin = pl.pallas_call(
        kernel,
        out_shape=(
            jax.ShapeDtypeStruct((seq, bs, out_p), jnp.float32),   # y (lane-dense)
            jax.ShapeDtypeStruct((bs, hidden), jnp.float32),       # h_n
            jax.ShapeDtypeStruct((bs, hidden), jnp.float32),       # c_n
        ),
        in_specs=[vmem] * 8,
        out_specs=[vmem] * 3,
        scratch_shapes=[
            pltpu.VMEM((seq, bs, 4 * hidden), jnp.float32),        # x projections
            pltpu.VMEM((seq, bs, hidden), jnp.float32),            # h sequence
        ],
    )(x_tb, wih_t, whh_t, bias, wfc_p, bfc_p, h_init, c_init)

    y = jnp.transpose(y_pad[:, :, :out_size], (1, 0, 2))           # (bs, seq, Out)
    # PyTorch returns h/c with a leading num_layers*num_directions dim of 1.
    return y, (h_fin[None, ...], c_fin[None, ...])


def init_params(key, hidden_size, output_size):
    """Deterministic init mirroring PyTorch's U(-1/sqrt(H), 1/sqrt(H))."""
    k = 1.0 / np.sqrt(hidden_size)
    keys = jax.random.split(key, 6)
    u = lambda kk, shape: jax.random.uniform(kk, shape, jnp.float32, -k, k)
    return {
        "w_ih": u(keys[0], (4 * hidden_size, output_size)),
        "w_hh": u(keys[1], (4 * hidden_size, hidden_size)),
        "b_ih": u(keys[2], (4 * hidden_size,)),
        "b_hh": u(keys[3], (4 * hidden_size,)),
        "w_fc": u(keys[4], (output_size, hidden_size)),
        "b_fc": u(keys[5], (output_size,)),
    }


def decoder_reference(params, x, h0=None):
    """Pure-JAX f32 reference (lax.scan LSTM) for correctness checking."""
    bs, seq, out_size = x.shape
    hidden = params["w_hh"].shape[1]
    if h0 is None:
        h = jnp.zeros((bs, hidden), jnp.float32)
        c = jnp.zeros((bs, hidden), jnp.float32)
    else:
        h, c = h0[0].reshape(bs, hidden), h0[1].reshape(bs, hidden)

    wih_t, whh_t = params["w_ih"].T, params["w_hh"].T
    bias = params["b_ih"] + params["b_hh"]
    H = hidden

    def step(carry, x_t):
        h, c = carry
        gates = x_t @ wih_t + h @ whh_t + bias
        i = jax.nn.sigmoid(gates[:, 0 * H:1 * H])
        f = jax.nn.sigmoid(gates[:, 1 * H:2 * H])
        g = jnp.tanh(gates[:, 2 * H:3 * H])
        o = jax.nn.sigmoid(gates[:, 3 * H:4 * H])
        c_new = f * c + i * g
        h_new = o * jnp.tanh(c_new)
        return (h_new, c_new), h_new

    (h, c), hs = jax.lax.scan(step, (h, c), jnp.transpose(x, (1, 0, 2)))
    hs = jnp.transpose(hs, (1, 0, 2))
    y = hs @ params["w_fc"].T + params["b_fc"]
    return y, (h[None, ...], c[None, ...])


if __name__ == "__main__":
    bs, seq, hidden_size, output_size = 2, 8, 32, 4

    key = jax.random.PRNGKey(0)
    pkey, xkey = jax.random.split(key)
    params = init_params(pkey, hidden_size, output_size)
    x = jax.random.normal(xkey, (bs, seq, output_size), jnp.float32)

    y, (h_n, c_n) = decoder_forward(params, x, h0=None)
    jax.block_until_ready((y, h_n, c_n))

    y_ref, (h_ref, c_ref) = decoder_reference(params, x, h0=None)
    np.testing.assert_allclose(np.asarray(y), np.asarray(y_ref), atol=2e-2, rtol=2e-2)
    np.testing.assert_allclose(np.asarray(h_n), np.asarray(h_ref), atol=2e-2, rtol=2e-2)
    np.testing.assert_allclose(np.asarray(c_n), np.asarray(c_ref), atol=2e-2, rtol=2e-2)

    assert y.shape == (bs, seq, output_size)
    assert h_n.shape == (1, bs, hidden_size) and c_n.shape == (1, bs, hidden_size)

    print("KERNEL_OK")
</pallas_src>

<mosaic_0001>
module attributes {stable_mosaic.version = 11 : i64} {
  func.func @decoder_kernel(%arg0: memref<8x2x4xbf16, #tpu.memory_space<vmem>>, %arg1: memref<4x128xbf16, #tpu.memory_space<vmem>>, %arg2: memref<32x128xbf16, #tpu.memory_space<vmem>>, %arg3: memref<1x128xf32, #tpu.memory_space<vmem>>, %arg4: memref<32x128xbf16, #tpu.memory_space<vmem>>, %arg5: memref<1x128xf32, #tpu.memory_space<vmem>>, %arg6: memref<2x32xf32, #tpu.memory_space<vmem>>, %arg7: memref<2x32xf32, #tpu.memory_space<vmem>>, %arg8: memref<8x2x128xf32, #tpu.memory_space<vmem>>, %arg9: memref<2x32xf32, #tpu.memory_space<vmem>>, %arg10: memref<2x32xf32, #tpu.memory_space<vmem>>, %arg11: memref<8x2x128xf32, #tpu.memory_space<vmem>>, %arg12: memref<8x2x32xf32, #tpu.memory_space<vmem>>) attributes {dimension_semantics = [], scalar_prefetch = 0 : i64, scratch_operands = 2 : i64, tpu.core_type = #tpu.core_type<tc>} {
    %c0 = arith.constant 0 : index
    %c0_0 = arith.constant 0 : index
    %0 = vector.load %arg1[%c0, %c0_0] : memref<4x128xbf16, #tpu.memory_space<vmem>>, vector<4x128xbf16>
    %c0_1 = arith.constant 0 : index
    %c0_2 = arith.constant 0 : index
    %1 = vector.load %arg2[%c0_1, %c0_2] : memref<32x128xbf16, #tpu.memory_space<vmem>>, vector<32x128xbf16>
    %c0_3 = arith.constant 0 : index
    %c0_4 = arith.constant 0 : index
    %2 = vector.load %arg3[%c0_3, %c0_4] : memref<1x128xf32, #tpu.memory_space<vmem>>, vector<1x128xf32>
    %c0_5 = arith.constant 0 : index
    %c0_6 = arith.constant 0 : index
    %c0_7 = arith.constant 0 : index
    %3 = vector.load %arg0[%c0_5, %c0_6, %c0_7] : memref<8x2x4xbf16, #tpu.memory_space<vmem>>, vector<1x2x4xbf16>
    %4 = vector.shape_cast %3 : vector<1x2x4xbf16> to vector<2x4xbf16>
    %cst = arith.constant dense<0.000000e+00> : vector<2x128xf32>
    %5 = tpu.matmul %4, %0, %cst {dimension_numbers = #tpu.dot_dimension_numbers<[1], [0], [0], [1], [0, 0, 1, 1], [], []>} : vector<2x4xbf16>, vector<4x128xbf16>, vector<2x128xf32> -> vector<2x128xf32>
    %6 = vector.broadcast %2 : vector<1x128xf32> to vector<2x128xf32>
    %7 = arith.addf %5, %6 : vector<2x128xf32>
    %c0_8 = arith.constant 0 : index
    %c0_9 = arith.constant 0 : index
    %c0_10 = arith.constant 0 : index
    %8 = vector.load %arg11[%c0_8, %c0_9, %c0_10] : memref<8x2x128xf32, #tpu.memory_space<vmem>>, vector<1x2x128xf32>
    %9 = vector.shape_cast %8 : vector<1x2x128xf32> to vector<2x128xf32>
    %10 = vector.shape_cast %7 : vector<2x128xf32> to vector<1x2x128xf32>
    tpu.vector_store %arg11[%c0_8, %c0_9, %c0_10], %10 {strides = array<i32>} : memref<8x2x128xf32, #tpu.memory_space<vmem>>, vector<1x2x128xf32>,
    %c1 = arith.constant 1 : index
    %c0_11 = arith.constant 0 : index
    %c0_12 = arith.constant 0 : index
    %11 = vector.load %arg0[%c1, %c0_11, %c0_12] : memref<8x2x4xbf16, #tpu.memory_space<vmem>>, vector<1x2x4xbf16>
    %12 = vector.shape_cast %11 : vector<1x2x4xbf16> to vector<2x4xbf16>
    %cst_13 = arith.constant dense<0.000000e+00> : vector<2x128xf32>
    %13 = tpu.matmul %12, %0, %cst_13 {dimension_numbers = #tpu.dot_dimension_numbers<[1], [0], [0], [1], [0, 0, 1, 1], [], []>} : vector<2x4xbf16>, vector<4x128xbf16>, vector<2x128xf32> -> vector<2x128xf32>
    %14 = vector.broadcast %2 : vector<1x128xf32> to vector<2x128xf32>
    %15 = arith.addf %13, %14 : vector<2x128xf32>
    %c1_14 = arith.constant 1 : index
    %c0_15 = arith.constant 0 : index
    %c0_16 = arith.constant 0 : index
    %16 = vector.load %arg11[%c1_14, %c0_15, %c0_16] : memref<8x2x128xf32, #tpu.memory_space<vmem>>, vector<1x2x128xf32>
    %17 = vector.shape_cast %16 : vector<1x2x128xf32> to vector<2x128xf32>
    %18 = vector.shape_cast %15 : vector<2x128xf32> to vector<1x2x128xf32>
    tpu.vector_store %arg11[%c1_14, %c0_15, %c0_16], %18 {strides = array<i32>} : memref<8x2x128xf32, #tpu.memory_space<vmem>>, vector<1x2x128xf32>,
    %c2 = arith.constant 2 : index
    %c0_17 = arith.constant 0 : index
    %c0_18 = arith.constant 0 : index
    %19 = vector.load %arg0[%c2, %c0_17, %c0_18] : memref<8x2x4xbf16, #tpu.memory_space<vmem>>, vector<1x2x4xbf16>
    %20 = vector.shape_cast %19 : vector<1x2x4xbf16> to vector<2x4xbf16>
    %cst_19 = arith.constant dense<0.000000e+00> : vector<2x128xf32>
    %21 = tpu.matmul %20, %0, %cst_19 {dimension_numbers = #tpu.dot_dimension_numbers<[1], [0], [0], [1], [0, 0, 1, 1], [], []>} : vector<2x4xbf16>, vector<4x128xbf16>, vector<2x128xf32> -> vector<2x128xf32>
    %22 = vector.broadcast %2 : vector<1x128xf32> to vector<2x128xf32>
    %23 = arith.addf %21, %22 : vector<2x128xf32>
    %c2_20 = arith.constant 2 : index
    %c0_21 = arith.constant 0 : index
    %c0_22 = arith.constant 0 : index
    %24 = vector.load %arg11[%c2_20, %c0_21, %c0_22] : memref<8x2x128xf32, #tpu.memory_space<vmem>>, vector<1x2x128xf32>
    %25 = vector.shape_cast %24 : vector<1x2x128xf32> to vector<2x128xf32>
    %26 = vector.shape_cast %23 : vector<2x128xf32> to vector<1x2x128xf32>
    tpu.vector_store %arg11[%c2_20, %c0_21, %c0_22], %26 {strides = array<i32>} : memref<8x2x128xf32, #tpu.memory_space<vmem>>, vector<1x2x128xf32>,
    %c3 = arith.constant 3 : index
    %c0_23 = arith.constant 0 : index
    %c0_24 = arith.constant 0 : index
    %27 = vector.load %arg0[%c3, %c0_23, %c0_24] : memref<8x2x4xbf16, #tpu.memory_space<vmem>>, vector<1x2x4xbf16>
    %28 = vector.shape_cast %27 : vector<1x2x4xbf16> to vector<2x4xbf16>
    %cst_25 = arith.constant dense<0.000000e+00> : vector<2x128xf32>
    %29 = tpu.matmul %28, %0, %cst_25 {dimension_numbers = #tpu.dot_dimension_numbers<[1], [0], [0], [1], [0, 0, 1, 1], [], []>} : vector<2x4xbf16>, vector<4x128xbf16>, vector<2x128xf32> -> vector<2x128xf32>
    %30 = vector.broadcast %2 : vector<1x128xf32> to vector<2x128xf32>
    %31 = arith.addf %29, %30 : vector<2x128xf32>
    %c3_26 = arith.constant 3 : index
    %c0_27 = arith.constant 0 : index
    %c0_28 = arith.constant 0 : index
    %32 = vector.load %arg11[%c3_26, %c0_27, %c0_28] : memref<8x2x128xf32, #tpu.memory_space<vmem>>, vector<1x2x128xf32>
    %33 = vector.shape_cast %32 : vector<1x2x128xf32> to vector<2x128xf32>
    %34 = vector.shape_cast %31 : vector<2x128xf32> to vector<1x2x128xf32>
    tpu.vector_store %arg11[%c3_26, %c0_27, %c0_28], %34 {strides = array<i32>} : memref<8x2x128xf32, #tpu.memory_space<vmem>>, vector<1x2x128xf32>,
    %c4 = arith.constant 4 : index
    %c0_29 = arith.constant 0 : index
    %c0_30 = arith.constant 0 : index
    %35 = vector.load %arg0[%c4, %c0_29, %c0_30] : memref<8x2x4xbf16, #tpu.memory_space<vmem>>, vector<1x2x4xbf16>
    %36 = vector.shape_cast %35 : vector<1x2x4xbf16> to vector<2x4xbf16>
    %cst_31 = arith.constant dense<0.000000e+00> : vector<2x128xf32>
    %37 = tpu.matmul %36, %0, %cst_31 {dimension_numbers = #tpu.dot_dimension_numbers<[1], [0], [0], [1], [0, 0, 1, 1], [], []>} : vector<2x4xbf16>, vector<4x128xbf16>, vector<2x128xf32> -> vector<2x128xf32>
    %38 = vector.broadcast %2 : vector<1x128xf32> to vector<2x128xf32>
    %39 = arith.addf %37, %38 : vector<2x128xf32>
    %c4_32 = arith.constant 4 : index
    %c0_33 = arith.constant 0 : index
    %c0_34 = arith.constant 0 : index
    %40 = vector.load %arg11[%c4_32, %c0_33, %c0_34] : memref<8x2x128xf32, #tpu.memory_space<vmem>>, vector<1x2x128xf32>
    %41 = vector.shape_cast %40 : vector<1x2x128xf32> to vector<2x128xf32>
    %42 = vector.shape_cast %39 : vector<2x128xf32> to vector<1x2x128xf32>
    tpu.vector_store %arg11[%c4_32, %c0_33, %c0_34], %42 {strides = array<i32>} : memref<8x2x128xf32, #tpu.memory_space<vmem>>, vector<1x2x128xf32>,
    %c5 = arith.constant 5 : index
    %c0_35 = arith.constant 0 : index
    %c0_36 = arith.constant 0 : index
    %43 = vector.load %arg0[%c5, %c0_35, %c0_36] : memref<8x2x4xbf16, #tpu.memory_space<vmem>>, vector<1x2x4xbf16>
    %44 = vector.shape_cast %43 : vector<1x2x4xbf16> to vector<2x4xbf16>
    %cst_37 = arith.constant dense<0.000000e+00> : vector<2x128xf32>
    %45 = tpu.matmul %44, %0, %cst_37 {dimension_numbers = #tpu.dot_dimension_numbers<[1], [0], [0], [1], [0, 0, 1, 1], [], []>} : vector<2x4xbf16>, vector<4x128xbf16>, vector<2x128xf32> -> vector<2x128xf32>
    %46 = vector.broadcast %2 : vector<1x128xf32> to vector<2x128xf32>
    %47 = arith.addf %45, %46 : vector<2x128xf32>
    %c5_38 = arith.constant 5 : index
    %c0_39 = arith.constant 0 : index
    %c0_40 = arith.constant 0 : index
    %48 = vector.load %arg11[%c5_38, %c0_39, %c0_40] : memref<8x2x128xf32, #tpu.memory_space<vmem>>, vector<1x2x128xf32>
    %49 = vector.shape_cast %48 : vector<1x2x128xf32> to vector<2x128xf32>
    %50 = vector.shape_cast %47 : vector<2x128xf32> to vector<1x2x128xf32>
    tpu.vector_store %arg11[%c5_38, %c0_39, %c0_40], %50 {strides = array<i32>} : memref<8x2x128xf32, #tpu.memory_space<vmem>>, vector<1x2x128xf32>,
    %c6 = arith.constant 6 : index
    %c0_41 = arith.constant 0 : index
    %c0_42 = arith.constant 0 : index
    %51 = vector.load %arg0[%c6, %c0_41, %c0_42] : memref<8x2x4xbf16, #tpu.memory_space<vmem>>, vector<1x2x4xbf16>
    %52 = vector.shape_cast %51 : vector<1x2x4xbf16> to vector<2x4xbf16>
    %cst_43 = arith.constant dense<0.000000e+00> : vector<2x128xf32>
    %53 = tpu.matmul %52, %0, %cst_43 {dimension_numbers = #tpu.dot_dimension_numbers<[1], [0], [0], [1], [0, 0, 1, 1], [], []>} : vector<2x4xbf16>, vector<4x128xbf16>, vector<2x128xf32> -> vector<2x128xf32>
    %54 = vector.broadcast %2 : vector<1x128xf32> to vector<2x128xf32>
    %55 = arith.addf %53, %54 : vector<2x128xf32>
    %c6_44 = arith.constant 6 : index
    %c0_45 = arith.constant 0 : index
    %c0_46 = arith.constant 0 : index
    %56 = vector.load %arg11[%c6_44, %c0_45, %c0_46] : memref<8x2x128xf32, #tpu.memory_space<vmem>>, vector<1x2x128xf32>
    %57 = vector.shape_cast %56 : vector<1x2x128xf32> to vector<2x128xf32>
    %58 = vector.shape_cast %55 : vector<2x128xf32> to vector<1x2x128xf32>
    tpu.vector_store %arg11[%c6_44, %c0_45, %c0_46], %58 {strides = array<i32>} : memref<8x2x128xf32, #tpu.memory_space<vmem>>, vector<1x2x128xf32>,
    %c7 = arith.constant 7 : index
    %c0_47 = arith.constant 0 : index
    %c0_48 = arith.constant 0 : index
    %59 = vector.load %arg0[%c7, %c0_47, %c0_48] : memref<8x2x4xbf16, #tpu.memory_space<vmem>>, vector<1x2x4xbf16>
    %60 = vector.shape_cast %59 : vector<1x2x4xbf16> to vector<2x4xbf16>
    %cst_49 = arith.constant dense<0.000000e+00> : vector<2x128xf32>
    %61 = tpu.matmul %60, %0, %cst_49 {dimension_numbers = #tpu.dot_dimension_numbers<[1], [0], [0], [1], [0, 0, 1, 1], [], []>} : vector<2x4xbf16>, vector<4x128xbf16>, vector<2x128xf32> -> vector<2x128xf32>
    %62 = vector.broadcast %2 : vector<1x128xf32> to vector<2x128xf32>
    %63 = arith.addf %61, %62 : vector<2x128xf32>
    %c7_50 = arith.constant 7 : index
    %c0_51 = arith.constant 0 : index
    %c0_52 = arith.constant 0 : index
    %64 = vector.load %arg11[%c7_50, %c0_51, %c0_52] : memref<8x2x128xf32, #tpu.memory_space<vmem>>, vector<1x2x128xf32>
    %65 = vector.shape_cast %64 : vector<1x2x128xf32> to vector<2x128xf32>
    %66 = vector.shape_cast %63 : vector<2x128xf32> to vector<1x2x128xf32>
    tpu.vector_store %arg11[%c7_50, %c0_51, %c0_52], %66 {strides = array<i32>} : memref<8x2x128xf32, #tpu.memory_space<vmem>>, vector<1x2x128xf32>,
    %c0_53 = arith.constant 0 : index
    %c0_54 = arith.constant 0 : index
    %67 = vector.load %arg6[%c0_53, %c0_54] : memref<2x32xf32, #tpu.memory_space<vmem>>, vector<2x32xf32>
    %c0_55 = arith.constant 0 : index
    %c0_56 = arith.constant 0 : index
    %68 = vector.load %arg7[%c0_55, %c0_56] : memref<2x32xf32, #tpu.memory_space<vmem>>, vector<2x32xf32>
    %c0_i32 = arith.constant 0 : i32
    %69 = arith.index_cast %c0_i32 : i32 to index
    %c0_57 = arith.constant 0 : index
    %c0_58 = arith.constant 0 : index
    %70 = vector.load %arg11[%69, %c0_57, %c0_58] : memref<8x2x128xf32, #tpu.memory_space<vmem>>, vector<1x2x128xf32>
    %71 = vector.shape_cast %70 : vector<1x2x128xf32> to vector<2x128xf32>
    %72 = arith.truncf %67 : vector<2x32xf32> to vector<2x32xbf16>
    %cst_59 = arith.constant dense<0.000000e+00> : vector<2x128xf32>
    %73 = tpu.matmul %72, %1, %cst_59 {dimension_numbers = #tpu.dot_dimension_numbers<[1], [0], [0], [1], [0, 0, 1, 1], [], []>} : vector<2x32xbf16>, vector<32x128xbf16>, vector<2x128xf32> -> vector<2x128xf32>
    %74 = arith.addf %71, %73 : vector<2x128xf32>
    %75 = vector.extract_strided_slice %74 {offsets = [0, 0], sizes = [2, 32], strides = [1, 1]} : vector<2x128xf32> to vector<2x32xf32>
    %76 = arith.negf %75 : vector<2x32xf32>
    %77 = math.exp %76 : vector<2x32xf32>
    %cst_60 = arith.constant 1.000000e+00 : f32
    %78 = vector.broadcast %cst_60 : f32 to vector<2x32xf32>
    %79 = arith.addf %78, %77 : vector<2x32xf32>
    %80 = arith.divf %78, %79 : vector<2x32xf32>
    %81 = vector.extract_strided_slice %74 {offsets = [0, 32], sizes = [2, 32], strides = [1, 1]} : vector<2x128xf32> to vector<2x32xf32>
    %82 = arith.negf %81 : vector<2x32xf32>
    %83 = math.exp %82 : vector<2x32xf32>
    %cst_61 = arith.constant 1.000000e+00 : f32
    %84 = vector.broadcast %cst_61 : f32 to vector<2x32xf32>
    %85 = arith.addf %84, %83 : vector<2x32xf32>
    %86 = arith.divf %84, %85 : vector<2x32xf32>
    %87 = vector.extract_strided_slice %74 {offsets = [0, 64], sizes = [2, 32], strides = [1, 1]} : vector<2x128xf32> to vector<2x32xf32>
    %88 = math.tanh %87 : vector<2x32xf32>
    %89 = vector.extract_strided_slice %74 {offsets = [0, 96], sizes = [2, 32], strides = [1, 1]} : vector<2x128xf32> to vector<2x32xf32>
    %90 = arith.negf %89 : vector<2x32xf32>
    %91 = math.exp %90 : vector<2x32xf32>
    %cst_62 = arith.constant 1.000000e+00 : f32
    %92 = vector.broadcast %cst_62 : f32 to vector<2x32xf32>
    %93 = arith.addf %92, %91 : vector<2x32xf32>
    %94 = arith.divf %92, %93 : vector<2x32xf32>
    %95 = arith.mulf %86, %68 : vector<2x32xf32>
    %96 = arith.mulf %80, %88 : vector<2x32xf32>
    %97 = arith.addf %95, %96 : vector<2x32xf32>
    %98 = math.tanh %97 : vector<2x32xf32>
    %99 = arith.mulf %94, %98 : vector<2x32xf32>
    %100 = arith.index_cast %c0_i32 : i32 to index
    %c0_63 = arith.constant 0 : index
    %c0_64 = arith.constant 0 : index
    %101 = vector.load %arg12[%100, %c0_63, %c0_64] : memref<8x2x32xf32, #tpu.memory_space<vmem>>, vector<1x2x32xf32>
    %102 = vector.shape_cast %101 : vector<1x2x32xf32> to vector<2x32xf32>
    %103 = vector.shape_cast %99 : vector<2x32xf32> to vector<1x2x32xf32>
    tpu.vector_store %arg12[%100, %c0_63, %c0_64], %103 {strides = array<i32>} : memref<8x2x32xf32, #tpu.memory_space<vmem>>, vector<1x2x32xf32>,
    %c1_i32 = arith.constant 1 : i32
    %104 = arith.index_cast %c1_i32 : i32 to index
    %c0_65 = arith.constant 0 : index
    %c0_66 = arith.constant 0 : index
    %105 = vector.load %arg11[%104, %c0_65, %c0_66] : memref<8x2x128xf32, #tpu.memory_space<vmem>>, vector<1x2x128xf32>
    %106 = vector.shape_cast %105 : vector<1x2x128xf32> to vector<2x128xf32>
    %107 = arith.truncf %99 : vector<2x32xf32> to vector<2x32xbf16>
    %cst_67 = arith.constant dense<0.000000e+00> : vector<2x128xf32>
    %108 = tpu.matmul %107, %1, %cst_67 {dimension_numbers = #tpu.dot_dimension_numbers<[1], [0], [0], [1], [0, 0, 1, 1], [], []>} : vector<2x32xbf16>, vector<32x128xbf16>, vector<2x128xf32> -> vector<2x128xf32>
    %109 = arith.addf %106, %108 : vector<2x128xf32>
    %110 = vector.extract_strided_slice %109 {offsets = [0, 0], sizes = [2, 32], strides = [1, 1]} : vector<2x128xf32> to vector<2x32xf32>
    %111 = arith.negf %110 : vector<2x32xf32>
    %112 = math.exp %111 : vector<2x32xf32>
    %cst_68 = arith.constant 1.000000e+00 : f32
    %113 = vector.broadcast %cst_68 : f32 to vector<2x32xf32>
    %114 = arith.addf %113, %112 : vector<2x32xf32>
    %115 = arith.divf %113, %114 : vector<2x32xf32>
    %116 = vector.extract_strided_slice %109 {offsets = [0, 32], sizes = [2, 32], strides = [1, 1]} : vector<2x128xf32> to vector<2x32xf32>
    %117 = arith.negf %116 : vector<2x32xf32>
    %118 = math.exp %117 : vector<2x32xf32>
    %cst_69 = arith.constant 1.000000e+00 : f32
    %119 = vector.broadcast %cst_69 : f32 to vector<2x32xf32>
    %120 = arith.addf %119, %118 : vector<2x32xf32>
    %121 = arith.divf %119, %120 : vector<2x32xf32>
    %122 = vector.extract_strided_slice %109 {offsets = [0, 64], sizes = [2, 32], strides = [1, 1]} : vector<2x128xf32> to vector<2x32xf32>
    %123 = math.tanh %122 : vector<2x32xf32>
    %124 = vector.extract_strided_slice %109 {offsets = [0, 96], sizes = [2, 32], strides = [1, 1]} : vector<2x128xf32> to vector<2x32xf32>
    %125 = arith.negf %124 : vector<2x32xf32>
    %126 = math.exp %125 : vector<2x32xf32>
    %cst_70 = arith.constant 1.000000e+00 : f32
    %127 = vector.broadcast %cst_70 : f32 to vector<2x32xf32>
    %128 = arith.addf %127, %126 : vector<2x32xf32>
    %129 = arith.divf %127, %128 : vector<2x32xf32>
    %130 = arith.mulf %121, %97 : vector<2x32xf32>
    %131 = arith.mulf %115, %123 : vector<2x32xf32>
    %132 = arith.addf %130, %131 : vector<2x32xf32>
    %133 = math.tanh %132 : vector<2x32xf32>
    %134 = arith.mulf %129, %133 : vector<2x32xf32>
    %135 = arith.index_cast %c1_i32 : i32 to index
    %c0_71 = arith.constant 0 : index
    %c0_72 = arith.constant 0 : index
    %136 = vector.load %arg12[%135, %c0_71, %c0_72] : memref<8x2x32xf32, #tpu.memory_space<vmem>>, vector<1x2x32xf32>
    %137 = vector.shape_cast %136 : vector<1x2x32xf32> to vector<2x32xf32>
    %138 = vector.shape_cast %134 : vector<2x32xf32> to vector<1x2x32xf32>
    tpu.vector_store %arg12[%135, %c0_71, %c0_72], %138 {strides = array<i32>} : memref<8x2x32xf32, #tpu.memory_space<vmem>>, vector<1x2x32xf32>,
    %c2_i32 = arith.constant 2 : i32
    %139 = arith.index_cast %c2_i32 : i32 to index
    %c0_73 = arith.constant 0 : index
    %c0_74 = arith.constant 0 : index
    %140 = vector.load %arg11[%139, %c0_73, %c0_74] : memref<8x2x128xf32, #tpu.memory_space<vmem>>, vector<1x2x128xf32>
    %141 = vector.shape_cast %140 : vector<1x2x128xf32> to vector<2x128xf32>
    %142 = arith.truncf %134 : vector<2x32xf32> to vector<2x32xbf16>
    %cst_75 = arith.constant dense<0.000000e+00> : vector<2x128xf32>
    %143 = tpu.matmul %142, %1, %cst_75 {dimension_numbers = #tpu.dot_dimension_numbers<[1], [0], [0], [1], [0, 0, 1, 1], [], []>} : vector<2x32xbf16>, vector<32x128xbf16>, vector<2x128xf32> -> vector<2x128xf32>
    %144 = arith.addf %141, %143 : vector<2x128xf32>
    %145 = vector.extract_strided_slice %144 {offsets = [0, 0], sizes = [2, 32], strides = [1, 1]} : vector<2x128xf32> to vector<2x32xf32>
    %146 = arith.negf %145 : vector<2x32xf32>
    %147 = math.exp %146 : vector<2x32xf32>
    %cst_76 = arith.constant 1.000000e+00 : f32
    %148 = vector.broadcast %cst_76 : f32 to vector<2x32xf32>
    %149 = arith.addf %148, %147 : vector<2x32xf32>
    %150 = arith.divf %148, %149 : vector<2x32xf32>
    %151 = vector.extract_strided_slice %144 {offsets = [0, 32], sizes = [2, 32], strides = [1, 1]} : vector<2x128xf32> to vector<2x32xf32>
    %152 = arith.negf %151 : vector<2x32xf32>
    %153 = math.exp %152 : vector<2x32xf32>
    %cst_77 = arith.constant 1.000000e+00 : f32
    %154 = vector.broadcast %cst_77 : f32 to vector<2x32xf32>
    %155 = arith.addf %154, %153 : vector<2x32xf32>
    %156 = arith.divf %154, %155 : vector<2x32xf32>
    %157 = vector.extract_strided_slice %144 {offsets = [0, 64], sizes = [2, 32], strides = [1, 1]} : vector<2x128xf32> to vector<2x32xf32>
    %158 = math.tanh %157 : vector<2x32xf32>
    %159 = vector.extract_strided_slice %144 {offsets = [0, 96], sizes = [2, 32], strides = [1, 1]} : vector<2x128xf32> to vector<2x32xf32>
    %160 = arith.negf %159 : vector<2x32xf32>
    %161 = math.exp %160 : vector<2x32xf32>
    %cst_78 = arith.constant 1.000000e+00 : f32
    %162 = vector.broadcast %cst_78 : f32 to vector<2x32xf32>
    %163 = arith.addf %162, %161 : vector<2x32xf32>
    %164 = arith.divf %162, %163 : vector<2x32xf32>
    %165 = arith.mulf %156, %132 : vector<2x32xf32>
    %166 = arith.mulf %150, %158 : vector<2x32xf32>
    %167 = arith.addf %165, %166 : vector<2x32xf32>
    %168 = math.tanh %167 : vector<2x32xf32>
    %169 = arith.mulf %164, %168 : vector<2x32xf32>
    %170 = arith.index_cast %c2_i32 : i32 to index
    %c0_79 = arith.constant 0 : index
    %c0_80 = arith.constant 0 : index
    %171 = vector.load %arg12[%170, %c0_79, %c0_80] : memref<8x2x32xf32, #tpu.memory_space<vmem>>, vector<1x2x32xf32>
    %172 = vector.shape_cast %171 : vector<1x2x32xf32> to vector<2x32xf32>
    %173 = vector.shape_cast %169 : vector<2x32xf32> to vector<1x2x32xf32>
    tpu.vector_store %arg12[%170, %c0_79, %c0_80], %173 {strides = array<i32>} : memref<8x2x32xf32, #tpu.memory_space<vmem>>, vector<1x2x32xf32>,
    %c3_i32 = arith.constant 3 : i32
    %174 = arith.index_cast %c3_i32 : i32 to index
    %c0_81 = arith.constant 0 : index
    %c0_82 = arith.constant 0 : index
    %175 = vector.load %arg11[%174, %c0_81, %c0_82] : memref<8x2x128xf32, #tpu.memory_space<vmem>>, vector<1x2x128xf32>
    %176 = vector.shape_cast %175 : vector<1x2x128xf32> to vector<2x128xf32>
    %177 = arith.truncf %169 : vector<2x32xf32> to vector<2x32xbf16>
    %cst_83 = arith.constant dense<0.000000e+00> : vector<2x128xf32>
    %178 = tpu.matmul %177, %1, %cst_83 {dimension_numbers = #tpu.dot_dimension_numbers<[1], [0], [0], [1], [0, 0, 1, 1], [], []>} : vector<2x32xbf16>, vector<32x128xbf16>, vector<2x128xf32> -> vector<2x128xf32>
    %179 = arith.addf %176, %178 : vector<2x128xf32>
    %180 = vector.extract_strided_slice %179 {offsets = [0, 0], sizes = [2, 32], strides = [1, 1]} : vector<2x128xf32> to vector<2x32xf32>
    %181 = arith.negf %180 : vector<2x32xf32>
    %182 = math.exp %181 : vector<2x32xf32>
    %cst_84 = arith.constant 1.000000e+00 : f32
    %183 = vector.broadcast %cst_84 : f32 to vector<2x32xf32>
    %184 = arith.addf %183, %182 : vector<2x32xf32>
    %185 = arith.divf %183, %184 : vector<2x32xf32>
    %186 = vector.extract_strided_slice %179 {offsets = [0, 32], sizes = [2, 32], strides = [1, 1]} : vector<2x128xf32> to vector<2x32xf32>
    %187 = arith.negf %186 : vector<2x32xf32>
    %188 = math.exp %187 : vector<2x32xf32>
    %cst_85 = arith.constant 1.000000e+00 : f32
    %189 = vector.broadcast %cst_85 : f32 to vector<2x32xf32>
    %190 = arith.addf %189, %188 : vector<2x32xf32>
    %191 = arith.divf %189, %190 : vector<2x32xf32>
    %192 = vector.extract_strided_slice %179 {offsets = [0, 64], sizes = [2, 32], strides = [1, 1]} : vector<2x128xf32> to vector<2x32xf32>
    %193 = math.tanh %192 : vector<2x32xf32>
    %194 = vector.extract_strided_slice %179 {offsets = [0, 96], sizes = [2, 32], strides = [1, 1]} : vector<2x128xf32> to vector<2x32xf32>
    %195 = arith.negf %194 : vector<2x32xf32>
    %196 = math.exp %195 : vector<2x32xf32>
    %cst_86 = arith.constant 1.000000e+00 : f32
    %197 = vector.broadcast %cst_86 : f32 to vector<2x32xf32>
    %198 = arith.addf %197, %196 : vector<2x32xf32>
    %199 = arith.divf %197, %198 : vector<2x32xf32>
    %200 = arith.mulf %191, %167 : vector<2x32xf32>
    %201 = arith.mulf %185, %193 : vector<2x32xf32>
    %202 = arith.addf %200, %201 : vector<2x32xf32>
    %203 = math.tanh %202 : vector<2x32xf32>
    %204 = arith.mulf %199, %203 : vector<2x32xf32>
    %205 = arith.index_cast %c3_i32 : i32 to index
    %c0_87 = arith.constant 0 : index
    %c0_88 = arith.constant 0 : index
    %206 = vector.load %arg12[%205, %c0_87, %c0_88] : memref<8x2x32xf32, #tpu.memory_space<vmem>>, vector<1x2x32xf32>
    %207 = vector.shape_cast %206 : vector<1x2x32xf32> to vector<2x32xf32>
    %208 = vector.shape_cast %204 : vector<2x32xf32> to vector<1x2x32xf32>
    tpu.vector_store %arg12[%205, %c0_87, %c0_88], %208 {strides = array<i32>} : memref<8x2x32xf32, #tpu.memory_space<vmem>>, vector<1x2x32xf32>,
    %c4_i32 = arith.constant 4 : i32
    %209 = arith.index_cast %c4_i32 : i32 to index
    %c0_89 = arith.constant 0 : index
    %c0_90 = arith.constant 0 : index
    %210 = vector.load %arg11[%209, %c0_89, %c0_90] : memref<8x2x128xf32, #tpu.memory_space<vmem>>, vector<1x2x128xf32>
    %211 = vector.shape_cast %210 : vector<1x2x128xf32> to vector<2x128xf32>
    %212 = arith.truncf %204 : vector<2x32xf32> to vector<2x32xbf16>
    %cst_91 = arith.constant dense<0.000000e+00> : vector<2x128xf32>
    %213 = tpu.matmul %212, %1, %cst_91 {dimension_numbers = #tpu.dot_dimension_numbers<[1], [0], [0], [1], [0, 0, 1, 1], [], []>} : vector<2x32xbf16>, vector<32x128xbf16>, vector<2x128xf32> -> vector<2x128xf32>
    %214 = arith.addf %211, %213 : vector<2x128xf32>
    %215 = vector.extract_strided_slice %214 {offsets = [0, 0], sizes = [2, 32], strides = [1, 1]} : vector<2x128xf32> to vector<2x32xf32>
    %216 = arith.negf %215 : vector<2x32xf32>
    %217 = math.exp %216 : vector<2x32xf32>
    %cst_92 = arith.constant 1.000000e+00 : f32
    %218 = vector.broadcast %cst_92 : f32 to vector<2x32xf32>
    %219 = arith.addf %218, %217 : vector<2x32xf32>
    %220 = arith.divf %218, %219 : vector<2x32xf32>
    %221 = vector.extract_strided_slice %214 {offsets = [0, 32], sizes = [2, 32], strides = [1, 1]} : vector<2x128xf32> to vector<2x32xf32>
    %222 = arith.negf %221 : vector<2x32xf32>
    %223 = math.exp %222 : vector<2x32xf32>
    %cst_93 = arith.constant 1.000000e+00 : f32
    %224 = vector.broadcast %cst_93 : f32 to vector<2x32xf32>
    %225 = arith.addf %224, %223 : vector<2x32xf32>
    %226 = arith.divf %224, %225 : vector<2x32xf32>
    %227 = vector.extract_strided_slice %214 {offsets = [0, 64], sizes = [2, 32], strides = [1, 1]} : vector<2x128xf32> to vector<2x32xf32>
    %228 = math.tanh %227 : vector<2x32xf32>
    %229 = vector.extract_strided_slice %214 {offsets = [0, 96], sizes = [2, 32], strides = [1, 1]} : vector<2x128xf32> to vector<2x32xf32>
    %230 = arith.negf %229 : vector<2x32xf32>
    %231 = math.exp %230 : vector<2x32xf32>
    %cst_94 = arith.constant 1.000000e+00 : f32
    %232 = vector.broadcast %cst_94 : f32 to vector<2x32xf32>
    %233 = arith.addf %232, %231 : vector<2x32xf32>
    %234 = arith.divf %232, %233 : vector<2x32xf32>
    %235 = arith.mulf %226, %202 : vector<2x32xf32>
    %236 = arith.mulf %220, %228 : vector<2x32xf32>
    %237 = arith.addf %235, %236 : vector<2x32xf32>
    %238 = math.tanh %237 : vector<2x32xf32>
    %239 = arith.mulf %234, %238 : vector<2x32xf32>
    %240 = arith.index_cast %c4_i32 : i32 to index
    %c0_95 = arith.constant 0 : index
    %c0_96 = arith.constant 0 : index
    %241 = vector.load %arg12[%240, %c0_95, %c0_96] : memref<8x2x32xf32, #tpu.memory_space<vmem>>, vector<1x2x32xf32>
    %242 = vector.shape_cast %241 : vector<1x2x32xf32> to vector<2x32xf32>
    %243 = vector.shape_cast %239 : vector<2x32xf32> to vector<1x2x32xf32>
    tpu.vector_store %arg12[%240, %c0_95, %c0_96], %243 {strides = array<i32>} : memref<8x2x32xf32, #tpu.memory_space<vmem>>, vector<1x2x32xf32>,
    %c5_i32 = arith.constant 5 : i32
    %244 = arith.index_cast %c5_i32 : i32 to index
    %c0_97 = arith.constant 0 : index
    %c0_98 = arith.constant 0 : index
    %245 = vector.load %arg11[%244, %c0_97, %c0_98] : memref<8x2x128xf32, #tpu.memory_space<vmem>>, vector<1x2x128xf32>
    %246 = vector.shape_cast %245 : vector<1x2x128xf32> to vector<2x128xf32>
    %247 = arith.truncf %239 : vector<2x32xf32> to vector<2x32xbf16>
    %cst_99 = arith.constant dense<0.000000e+00> : vector<2x128xf32>
    %248 = tpu.matmul %247, %1, %cst_99 {dimension_numbers = #tpu.dot_dimension_numbers<[1], [0], [0], [1], [0, 0, 1, 1], [], []>} : vector<2x32xbf16>, vector<32x128xbf16>, vector<2x128xf32> -> vector<2x128xf32>
    %249 = arith.addf %246, %248 : vector<2x128xf32>
    %250 = vector.extract_strided_slice %249 {offsets = [0, 0], sizes = [2, 32], strides = [1, 1]} : vector<2x128xf32> to vector<2x32xf32>
    %251 = arith.negf %250 : vector<2x32xf32>
    %252 = math.exp %251 : vector<2x32xf32>
    %cst_100 = arith.constant 1.000000e+00 : f32
    %253 = vector.broadcast %cst_100 : f32 to vector<2x32xf32>
    %254 = arith.addf %253, %252 : vector<2x32xf32>
    %255 = arith.divf %253, %254 : vector<2x32xf32>
    %256 = vector.extract_strided_slice %249 {offsets = [0, 32], sizes = [2, 32], strides = [1, 1]} : vector<2x128xf32> to vector<2x32xf32>
    %257 = arith.negf %256 : vector<2x32xf32>
    %258 = math.exp %257 : vector<2x32xf32>
    %cst_101 = arith.constant 1.000000e+00 : f32
    %259 = vector.broadcast %cst_101 : f32 to vector<2x32xf32>
    %260 = arith.addf %259, %258 : vector<2x32xf32>
    %261 = arith.divf %259, %260 : vector<2x32xf32>
    %262 = vector.extract_strided_slice %249 {offsets = [0, 64], sizes = [2, 32], strides = [1, 1]} : vector<2x128xf32> to vector<2x32xf32>
    %263 = math.tanh %262 : vector<2x32xf32>
    %264 = vector.extract_strided_slice %249 {offsets = [0, 96], sizes = [2, 32], strides = [1, 1]} : vector<2x128xf32> to vector<2x32xf32>
    %265 = arith.negf %264 : vector<2x32xf32>
    %266 = math.exp %265 : vector<2x32xf32>
    %cst_102 = arith.constant 1.000000e+00 : f32
    %267 = vector.broadcast %cst_102 : f32 to vector<2x32xf32>
    %268 = arith.addf %267, %266 : vector<2x32xf32>
    %269 = arith.divf %267, %268 : vector<2x32xf32>
    %270 = arith.mulf %261, %237 : vector<2x32xf32>
    %271 = arith.mulf %255, %263 : vector<2x32xf32>
    %272 = arith.addf %270, %271 : vector<2x32xf32>
    %273 = math.tanh %272 : vector<2x32xf32>
    %274 = arith.mulf %269, %273 : vector<2x32xf32>
    %275 = arith.index_cast %c5_i32 : i32 to index
    %c0_103 = arith.constant 0 : index
    %c0_104 = arith.constant 0 : index
    %276 = vector.load %arg12[%275, %c0_103, %c0_104] : memref<8x2x32xf32, #tpu.memory_space<vmem>>, vector<1x2x32xf32>
    %277 = vector.shape_cast %276 : vector<1x2x32xf32> to vector<2x32xf32>
    %278 = vector.shape_cast %274 : vector<2x32xf32> to vector<1x2x32xf32>
    tpu.vector_store %arg12[%275, %c0_103, %c0_104], %278 {strides = array<i32>} : memref<8x2x32xf32, #tpu.memory_space<vmem>>, vector<1x2x32xf32>,
    %c6_i32 = arith.constant 6 : i32
    %279 = arith.index_cast %c6_i32 : i32 to index
    %c0_105 = arith.constant 0 : index
    %c0_106 = arith.constant 0 : index
    %280 = vector.load %arg11[%279, %c0_105, %c0_106] : memref<8x2x128xf32, #tpu.memory_space<vmem>>, vector<1x2x128xf32>
    %281 = vector.shape_cast %280 : vector<1x2x128xf32> to vector<2x128xf32>
    %282 = arith.truncf %274 : vector<2x32xf32> to vector<2x32xbf16>
    %cst_107 = arith.constant dense<0.000000e+00> : vector<2x128xf32>
    %283 = tpu.matmul %282, %1, %cst_107 {dimension_numbers = #tpu.dot_dimension_numbers<[1], [0], [0], [1], [0, 0, 1, 1], [], []>} : vector<2x32xbf16>, vector<32x128xbf16>, vector<2x128xf32> -> vector<2x128xf32>
    %284 = arith.addf %281, %283 : vector<2x128xf32>
    %285 = vector.extract_strided_slice %284 {offsets = [0, 0], sizes = [2, 32], strides = [1, 1]} : vector<2x128xf32> to vector<2x32xf32>
    %286 = arith.negf %285 : vector<2x32xf32>
    %287 = math.exp %286 : vector<2x32xf32>
    %cst_108 = arith.constant 1.000000e+00 : f32
    %288 = vector.broadcast %cst_108 : f32 to vector<2x32xf32>
    %289 = arith.addf %288, %287 : vector<2x32xf32>
    %290 = arith.divf %288, %289 : vector<2x32xf32>
    %291 = vector.extract_strided_slice %284 {offsets = [0, 32], sizes = [2, 32], strides = [1, 1]} : vector<2x128xf32> to vector<2x32xf32>
    %292 = arith.negf %291 : vector<2x32xf32>
    %293 = math.exp %292 : vector<2x32xf32>
    %cst_109 = arith.constant 1.000000e+00 : f32
    %294 = vector.broadcast %cst_109 : f32 to vector<2x32xf32>
    %295 = arith.addf %294, %293 : vector<2x32xf32>
    %296 = arith.divf %294, %295 : vector<2x32xf32>
    %297 = vector.extract_strided_slice %284 {offsets = [0, 64], sizes = [2, 32], strides = [1, 1]} : vector<2x128xf32> to vector<2x32xf32>
    %298 = math.tanh %297 : vector<2x32xf32>
    %299 = vector.extract_strided_slice %284 {offsets = [0, 96], sizes = [2, 32], strides = [1, 1]} : vector<2x128xf32> to vector<2x32xf32>
    %300 = arith.negf %299 : vector<2x32xf32>
    %301 = math.exp %300 : vector<2x32xf32>
    %cst_110 = arith.constant 1.000000e+00 : f32
    %302 = vector.broadcast %cst_110 : f32 to vector<2x32xf32>
    %303 = arith.addf %302, %301 : vector<2x32xf32>
    %304 = arith.divf %302, %303 : vector<2x32xf32>
    %305 = arith.mulf %296, %272 : vector<2x32xf32>
    %306 = arith.mulf %290, %298 : vector<2x32xf32>
    %307 = arith.addf %305, %306 : vector<2x32xf32>
    %308 = math.tanh %307 : vector<2x32xf32>
    %309 = arith.mulf %304, %308 : vector<2x32xf32>
    %310 = arith.index_cast %c6_i32 : i32 to index
    %c0_111 = arith.constant 0 : index
    %c0_112 = arith.constant 0 : index
    %311 = vector.load %arg12[%310, %c0_111, %c0_112] : memref<8x2x32xf32, #tpu.memory_space<vmem>>, vector<1x2x32xf32>
    %312 = vector.shape_cast %311 : vector<1x2x32xf32> to vector<2x32xf32>
    %313 = vector.shape_cast %309 : vector<2x32xf32> to vector<1x2x32xf32>
    tpu.vector_store %arg12[%310, %c0_111, %c0_112], %313 {strides = array<i32>} : memref<8x2x32xf32, #tpu.memory_space<vmem>>, vector<1x2x32xf32>,
    %c7_i32 = arith.constant 7 : i32
    %314 = arith.index_cast %c7_i32 : i32 to index
    %c0_113 = arith.constant 0 : index
    %c0_114 = arith.constant 0 : index
    %315 = vector.load %arg11[%314, %c0_113, %c0_114] : memref<8x2x128xf32, #tpu.memory_space<vmem>>, vector<1x2x128xf32>
    %316 = vector.shape_cast %315 : vector<1x2x128xf32> to vector<2x128xf32>
    %317 = arith.truncf %309 : vector<2x32xf32> to vector<2x32xbf16>
    %cst_115 = arith.constant dense<0.000000e+00> : vector<2x128xf32>
    %318 = tpu.matmul %317, %1, %cst_115 {dimension_numbers = #tpu.dot_dimension_numbers<[1], [0], [0], [1], [0, 0, 1, 1], [], []>} : vector<2x32xbf16>, vector<32x128xbf16>, vector<2x128xf32> -> vector<2x128xf32>
    %319 = arith.addf %316, %318 : vector<2x128xf32>
    %320 = vector.extract_strided_slice %319 {offsets = [0, 0], sizes = [2, 32], strides = [1, 1]} : vector<2x128xf32> to vector<2x32xf32>
    %321 = arith.negf %320 : vector<2x32xf32>
    %322 = math.exp %321 : vector<2x32xf32>
    %cst_116 = arith.constant 1.000000e+00 : f32
    %323 = vector.broadcast %cst_116 : f32 to vector<2x32xf32>
    %324 = arith.addf %323, %322 : vector<2x32xf32>
    %325 = arith.divf %323, %324 : vector<2x32xf32>
    %326 = vector.extract_strided_slice %319 {offsets = [0, 32], sizes = [2, 32], strides = [1, 1]} : vector<2x128xf32> to vector<2x32xf32>
    %327 = arith.negf %326 : vector<2x32xf32>
    %328 = math.exp %327 : vector<2x32xf32>
    %cst_117 = arith.constant 1.000000e+00 : f32
    %329 = vector.broadcast %cst_117 : f32 to vector<2x32xf32>
    %330 = arith.addf %329, %328 : vector<2x32xf32>
    %331 = arith.divf %329, %330 : vector<2x32xf32>
    %332 = vector.extract_strided_slice %319 {offsets = [0, 64], sizes = [2, 32], strides = [1, 1]} : vector<2x128xf32> to vector<2x32xf32>
    %333 = math.tanh %332 : vector<2x32xf32>
    %334 = vector.extract_strided_slice %319 {offsets = [0, 96], sizes = [2, 32], strides = [1, 1]} : vector<2x128xf32> to vector<2x32xf32>
    %335 = arith.negf %334 : vector<2x32xf32>
    %336 = math.exp %335 : vector<2x32xf32>
    %cst_118 = arith.constant 1.000000e+00 : f32
    %337 = vector.broadcast %cst_118 : f32 to vector<2x32xf32>
    %338 = arith.addf %337, %336 : vector<2x32xf32>
    %339 = arith.divf %337, %338 : vector<2x32xf32>
    %340 = arith.mulf %331, %307 : vector<2x32xf32>
    %341 = arith.mulf %325, %333 : vector<2x32xf32>
    %342 = arith.addf %340, %341 : vector<2x32xf32>
    %343 = math.tanh %342 : vector<2x32xf32>
    %344 = arith.mulf %339, %343 : vector<2x32xf32>
    %345 = arith.index_cast %c7_i32 : i32 to index
    %c0_119 = arith.constant 0 : index
    %c0_120 = arith.constant 0 : index
    %346 = vector.load %arg12[%345, %c0_119, %c0_120] : memref<8x2x32xf32, #tpu.memory_space<vmem>>, vector<1x2x32xf32>
    %347 = vector.shape_cast %346 : vector<1x2x32xf32> to vector<2x32xf32>
    %348 = vector.shape_cast %344 : vector<2x32xf32> to vector<1x2x32xf32>
    tpu.vector_store %arg12[%345, %c0_119, %c0_120], %348 {strides = array<i32>} : memref<8x2x32xf32, #tpu.memory_space<vmem>>, vector<1x2x32xf32>,
    %c8_i32 = arith.constant 8 : i32
    %c0_121 = arith.constant 0 : index
    %c0_122 = arith.constant 0 : index
    %349 = vector.load %arg9[%c0_121, %c0_122] : memref<2x32xf32, #tpu.memory_space<vmem>>, vector<2x32xf32>
    tpu.vector_store %arg9[%c0_121, %c0_122], %344 {strides = array<i32>} : memref<2x32xf32, #tpu.memory_space<vmem>>, vector<2x32xf32>,
    %c0_123 = arith.constant 0 : index
    %c0_124 = arith.constant 0 : index
    %350 = vector.load %arg10[%c0_123, %c0_124] : memref<2x32xf32, #tpu.memory_space<vmem>>, vector<2x32xf32>
    tpu.vector_store %arg10[%c0_123, %c0_124], %342 {strides = array<i32>} : memref<2x32xf32, #tpu.memory_space<vmem>>, vector<2x32xf32>,
    %c0_125 = arith.constant 0 : index
    %c0_126 = arith.constant 0 : index
    %351 = vector.load %arg4[%c0_125, %c0_126] : memref<32x128xbf16, #tpu.memory_space<vmem>>, vector<32x128xbf16>
    %c0_127 = arith.constant 0 : index
    %c0_128 = arith.constant 0 : index
    %352 = vector.load %arg5[%c0_127, %c0_128] : memref<1x128xf32, #tpu.memory_space<vmem>>, vector<1x128xf32>
    %c0_129 = arith.constant 0 : index
    %c0_130 = arith.constant 0 : index
    %c0_131 = arith.constant 0 : index
    %353 = vector.load %arg12[%c0_129, %c0_130, %c0_131] : memref<8x2x32xf32, #tpu.memory_space<vmem>>, vector<1x2x32xf32>
    %354 = vector.shape_cast %353 : vector<1x2x32xf32> to vector<2x32xf32>
    %355 = arith.truncf %354 : vector<2x32xf32> to vector<2x32xbf16>
    %cst_132 = arith.constant dense<0.000000e+00> : vector<2x128xf32>
    %356 = tpu.matmul %355, %351, %cst_132 {dimension_numbers = #tpu.dot_dimension_numbers<[1], [0], [0], [1], [0, 0, 1, 1], [], []>} : vector<2x32xbf16>, vector<32x128xbf16>, vector<2x128xf32> -> vector<2x128xf32>
    %357 = vector.broadcast %352 : vector<1x128xf32> to vector<2x128xf32>
    %358 = arith.addf %356, %357 : vector<2x128xf32>
    %c0_133 = arith.constant 0 : index
    %c0_134 = arith.constant 0 : index
    %c0_135 = arith.constant 0 : index
    %359 = vector.load %arg8[%c0_133, %c0_134, %c0_135] : memref<8x2x128xf32, #tpu.memory_space<vmem>>, vector<1x2x128xf32>
    %360 = vector.shape_cast %359 : vector<1x2x128xf32> to vector<2x128xf32>
    %361 = vector.shape_cast %358 : vector<2x128xf32> to vector<1x2x128xf32>
    tpu.vector_store %arg8[%c0_133, %c0_134, %c0_135], %361 {strides = array<i32>} : memref<8x2x128xf32, #tpu.memory_space<vmem>>, vector<1x2x128xf32>,
    %c1_136 = arith.constant 1 : index
    %c0_137 = arith.constant 0 : index
    %c0_138 = arith.constant 0 : index
    %362 = vector.load %arg12[%c1_136, %c0_137, %c0_138] : memref<8x2x32xf32, #tpu.memory_space<vmem>>, vector<1x2x32xf32>
    %363 = vector.shape_cast %362 : vector<1x2x32xf32> to vector<2x32xf32>
    %364 = arith.truncf %363 : vector<2x32xf32> to vector<2x32xbf16>
    %cst_139 = arith.constant dense<0.000000e+00> : vector<2x128xf32>
    %365 = tpu.matmul %364, %351, %cst_139 {dimension_numbers = #tpu.dot_dimension_numbers<[1], [0], [0], [1], [0, 0, 1, 1], [], []>} : vector<2x32xbf16>, vector<32x128xbf16>, vector<2x128xf32> -> vector<2x128xf32>
    %366 = vector.broadcast %352 : vector<1x128xf32> to vector<2x128xf32>
    %367 = arith.addf %365, %366 : vector<2x128xf32>
    %c1_140 = arith.constant 1 : index
    %c0_141 = arith.constant 0 : index
    %c0_142 = arith.constant 0 : index
    %368 = vector.load %arg8[%c1_140, %c0_141, %c0_142] : memref<8x2x128xf32, #tpu.memory_space<vmem>>, vector<1x2x128xf32>
    %369 = vector.shape_cast %368 : vector<1x2x128xf32> to vector<2x128xf32>
    %370 = vector.shape_cast %367 : vector<2x128xf32> to vector<1x2x128xf32>
    tpu.vector_store %arg8[%c1_140, %c0_141, %c0_142], %370 {strides = array<i32>} : memref<8x2x128xf32, #tpu.memory_space<vmem>>, vector<1x2x128xf32>,
    %c2_143 = arith.constant 2 : index
    %c0_144 = arith.constant 0 : index
    %c0_145 = arith.constant 0 : index
    %371 = vector.load %arg12[%c2_143, %c0_144, %c0_145] : memref<8x2x32xf32, #tpu.memory_space<vmem>>, vector<1x2x32xf32>
    %372 = vector.shape_cast %371 : vector<1x2x32xf32> to vector<2x32xf32>
    %373 = arith.truncf %372 : vector<2x32xf32> to vector<2x32xbf16>
    %cst_146 = arith.constant dense<0.000000e+00> : vector<2x128xf32>
    %374 = tpu.matmul %373, %351, %cst_146 {dimension_numbers = #tpu.dot_dimension_numbers<[1], [0], [0], [1], [0, 0, 1, 1], [], []>} : vector<2x32xbf16>, vector<32x128xbf16>, vector<2x128xf32> -> vector<2x128xf32>
    %375 = vector.broadcast %352 : vector<1x128xf32> to vector<2x128xf32>
    %376 = arith.addf %374, %375 : vector<2x128xf32>
    %c2_147 = arith.constant 2 : index
    %c0_148 = arith.constant 0 : index
    %c0_149 = arith.constant 0 : index
    %377 = vector.load %arg8[%c2_147, %c0_148, %c0_149] : memref<8x2x128xf32, #tpu.memory_space<vmem>>, vector<1x2x128xf32>
    %378 = vector.shape_cast %377 : vector<1x2x128xf32> to vector<2x128xf32>
    %379 = vector.shape_cast %376 : vector<2x128xf32> to vector<1x2x128xf32>
    tpu.vector_store %arg8[%c2_147, %c0_148, %c0_149], %379 {strides = array<i32>} : memref<8x2x128xf32, #tpu.memory_space<vmem>>, vector<1x2x128xf32>,
    %c3_150 = arith.constant 3 : index
    %c0_151 = arith.constant 0 : index
    %c0_152 = arith.constant 0 : index
    %380 = vector.load %arg12[%c3_150, %c0_151, %c0_152] : memref<8x2x32xf32, #tpu.memory_space<vmem>>, vector<1x2x32xf32>
    %381 = vector.shape_cast %380 : vector<1x2x32xf32> to vector<2x32xf32>
    %382 = arith.truncf %381 : vector<2x32xf32> to vector<2x32xbf16>
    %cst_153 = arith.constant dense<0.000000e+00> : vector<2x128xf32>
    %383 = tpu.matmul %382, %351, %cst_153 {dimension_numbers = #tpu.dot_dimension_numbers<[1], [0], [0], [1], [0, 0, 1, 1], [], []>} : vector<2x32xbf16>, vector<32x128xbf16>, vector<2x128xf32> -> vector<2x128xf32>
    %384 = vector.broadcast %352 : vector<1x128xf32> to vector<2x128xf32>
    %385 = arith.addf %383, %384 : vector<2x128xf32>
    %c3_154 = arith.constant 3 : index
    %c0_155 = arith.constant 0 : index
    %c0_156 = arith.constant 0 : index
    %386 = vector.load %arg8[%c3_154, %c0_155, %c0_156] : memref<8x2x128xf32, #tpu.memory_space<vmem>>, vector<1x2x128xf32>
    %387 = vector.shape_cast %386 : vector<1x2x128xf32> to vector<2x128xf32>
    %388 = vector.shape_cast %385 : vector<2x128xf32> to vector<1x2x128xf32>
    tpu.vector_store %arg8[%c3_154, %c0_155, %c0_156], %388 {strides = array<i32>} : memref<8x2x128xf32, #tpu.memory_space<vmem>>, vector<1x2x128xf32>,
    %c4_157 = arith.constant 4 : index
    %c0_158 = arith.constant 0 : index
    %c0_159 = arith.constant 0 : index
    %389 = vector.load %arg12[%c4_157, %c0_158, %c0_159] : memref<8x2x32xf32, #tpu.memory_space<vmem>>, vector<1x2x32xf32>
    %390 = vector.shape_cast %389 : vector<1x2x32xf32> to vector<2x32xf32>
    %391 = arith.truncf %390 : vector<2x32xf32> to vector<2x32xbf16>
    %cst_160 = arith.constant dense<0.000000e+00> : vector<2x128xf32>
    %392 = tpu.matmul %391, %351, %cst_160 {dimension_numbers = #tpu.dot_dimension_numbers<[1], [0], [0], [1], [0, 0, 1, 1], [], []>} : vector<2x32xbf16>, vector<32x128xbf16>, vector<2x128xf32> -> vector<2x128xf32>
    %393 = vector.broadcast %352 : vector<1x128xf32> to vector<2x128xf32>
    %394 = arith.addf %392, %393 : vector<2x128xf32>
    %c4_161 = arith.constant 4 : index
    %c0_162 = arith.constant 0 : index
    %c0_163 = arith.constant 0 : index
    %395 = vector.load %arg8[%c4_161, %c0_162, %c0_163] : memref<8x2x128xf32, #tpu.memory_space<vmem>>, vector<1x2x128xf32>
    %396 = vector.shape_cast %395 : vector<1x2x128xf32> to vector<2x128xf32>
    %397 = vector.shape_cast %394 : vector<2x128xf32> to vector<1x2x128xf32>
    tpu.vector_store %arg8[%c4_161, %c0_162, %c0_163], %397 {strides = array<i32>} : memref<8x2x128xf32, #tpu.memory_space<vmem>>, vector<1x2x128xf32>,
    %c5_164 = arith.constant 5 : index
    %c0_165 = arith.constant 0 : index
    %c0_166 = arith.constant 0 : index
    %398 = vector.load %arg12[%c5_164, %c0_165, %c0_166] : memref<8x2x32xf32, #tpu.memory_space<vmem>>, vector<1x2x32xf32>
    %399 = vector.shape_cast %398 : vector<1x2x32xf32> to vector<2x32xf32>
    %400 = arith.truncf %399 : vector<2x32xf32> to vector<2x32xbf16>
    %cst_167 = arith.constant dense<0.000000e+00> : vector<2x128xf32>
    %401 = tpu.matmul %400, %351, %cst_167 {dimension_numbers = #tpu.dot_dimension_numbers<[1], [0], [0], [1], [0, 0, 1, 1], [], []>} : vector<2x32xbf16>, vector<32x128xbf16>, vector<2x128xf32> -> vector<2x128xf32>
    %402 = vector.broadcast %352 : vector<1x128xf32> to vector<2x128xf32>
    %403 = arith.addf %401, %402 : vector<2x128xf32>
    %c5_168 = arith.constant 5 : index
    %c0_169 = arith.constant 0 : index
    %c0_170 = arith.constant 0 : index
    %404 = vector.load %arg8[%c5_168, %c0_169, %c0_170] : memref<8x2x128xf32, #tpu.memory_space<vmem>>, vector<1x2x128xf32>
    %405 = vector.shape_cast %404 : vector<1x2x128xf32> to vector<2x128xf32>
    %406 = vector.shape_cast %403 : vector<2x128xf32> to vector<1x2x128xf32>
    tpu.vector_store %arg8[%c5_168, %c0_169, %c0_170], %406 {strides = array<i32>} : memref<8x2x128xf32, #tpu.memory_space<vmem>>, vector<1x2x128xf32>,
    %c6_171 = arith.constant 6 : index
    %c0_172 = arith.constant 0 : index
    %c0_173 = arith.constant 0 : index
    %407 = vector.load %arg12[%c6_171, %c0_172, %c0_173] : memref<8x2x32xf32, #tpu.memory_space<vmem>>, vector<1x2x32xf32>
    %408 = vector.shape_cast %407 : vector<1x2x32xf32> to vector<2x32xf32>
    %409 = arith.truncf %408 : vector<2x32xf32> to vector<2x32xbf16>
    %cst_174 = arith.constant dense<0.000000e+00> : vector<2x128xf32>
    %410 = tpu.matmul %409, %351, %cst_174 {dimension_numbers = #tpu.dot_dimension_numbers<[1], [0], [0], [1], [0, 0, 1, 1], [], []>} : vector<2x32xbf16>, vector<32x128xbf16>, vector<2x128xf32> -> vector<2x128xf32>
    %411 = vector.broadcast %352 : vector<1x128xf32> to vector<2x128xf32>
    %412 = arith.addf %410, %411 : vector<2x128xf32>
    %c6_175 = arith.constant 6 : index
    %c0_176 = arith.constant 0 : index
    %c0_177 = arith.constant 0 : index
    %413 = vector.load %arg8[%c6_175, %c0_176, %c0_177] : memref<8x2x128xf32, #tpu.memory_space<vmem>>, vector<1x2x128xf32>
    %414 = vector.shape_cast %413 : vector<1x2x128xf32> to vector<2x128xf32>
    %415 = vector.shape_cast %412 : vector<2x128xf32> to vector<1x2x128xf32>
    tpu.vector_store %arg8[%c6_175, %c0_176, %c0_177], %415 {strides = array<i32>} : memref<8x2x128xf32, #tpu.memory_space<vmem>>, vector<1x2x128xf32>,
    %c7_178 = arith.constant 7 : index
    %c0_179 = arith.constant 0 : index
    %c0_180 = arith.constant 0 : index
    %416 = vector.load %arg12[%c7_178, %c0_179, %c0_180] : memref<8x2x32xf32, #tpu.memory_space<vmem>>, vector<1x2x32xf32>
    %417 = vector.shape_cast %416 : vector<1x2x32xf32> to vector<2x32xf32>
    %418 = arith.truncf %417 : vector<2x32xf32> to vector<2x32xbf16>
    %cst_181 = arith.constant dense<0.000000e+00> : vector<2x128xf32>
    %419 = tpu.matmul %418, %351, %cst_181 {dimension_numbers = #tpu.dot_dimension_numbers<[1], [0], [0], [1], [0, 0, 1, 1], [], []>} : vector<2x32xbf16>, vector<32x128xbf16>, vector<2x128xf32> -> vector<2x128xf32>
    %420 = vector.broadcast %352 : vector<1x128xf32> to vector<2x128xf32>
    %421 = arith.addf %419, %420 : vector<2x128xf32>
    %c7_182 = arith.constant 7 : index
    %c0_183 = arith.constant 0 : index
    %c0_184 = arith.constant 0 : index
    %422 = vector.load %arg8[%c7_182, %c0_183, %c0_184] : memref<8x2x128xf32, #tpu.memory_space<vmem>>, vector<1x2x128xf32>
    %423 = vector.shape_cast %422 : vector<1x2x128xf32> to vector<2x128xf32>
    %424 = vector.shape_cast %421 : vector<2x128xf32> to vector<1x2x128xf32>
    tpu.vector_store %arg8[%c7_182, %c0_183, %c0_184], %424 {strides = array<i32>} : memref<8x2x128xf32, #tpu.memory_space<vmem>>, vector<1x2x128xf32>,
    return
  }
}

</mosaic_0001>

<llo_original>
// kernel: tpu_custom_call.1
$region0: #{tpu_custom_call.1}
  #allocation0 [shape = 'u32[]', space=smem, size = 0x4, offset = 0x4, fixed_abs, tag = 'smem constant byte address 0x4 - core index']
  #allocation1 [shape = 'u32[144,128]{1,0:T(1,128)}', space=vmem, size = 0x12000, scoped, tag = 'internal scratch']
  #allocation2 [shape = 'f32[8,2,128]{2,1,0:T(2,128)}', space=vmem, size = 0x2000, scoped, tag = 'scratch operand']
  #allocation3 [shape = 'f32[8,2,32]{2,1,0:T(2,128)}', space=vmem, size = 0x2000, scoped, tag = 'scratch operand']
  %s0 = inlined_call_operand.vmem [shape: bf16[8,2,4], index: 0, kind: input, shape index: {}]
  %s1 = inlined_call_operand.vmem [shape: bf16[4,128], index: 1, kind: input, shape index: {}]
  %s2 = inlined_call_operand.hbm [shape: bf16[32,128], index: 2, kind: input, shape index: {}]
  %s3 = inlined_call_operand.hbm [shape: f32[1,128], index: 3, kind: input, shape index: {}]
  %s4 = inlined_call_operand.vmem [shape: bf16[32,128], index: 4, kind: input, shape index: {}]
  %s5 = inlined_call_operand.hbm [shape: f32[1,128], index: 5, kind: input, shape index: {}]
  %s6 = inlined_call_operand.vmem [shape: f32[2,32], index: 6, kind: input, shape index: {}]
  %s7 = inlined_call_operand.vmem [shape: f32[2,32], index: 7, kind: input, shape index: {}]
  %s8 = inlined_call_operand.hbm [shape: f32[8,2,128], index: 8, kind: output, shape index: {0}]
  %s9 = inlined_call_operand.hbm [shape: f32[2,32], index: 9, kind: output, shape index: {1}]
  %s10 = inlined_call_operand.hbm [shape: f32[2,32], index: 10, kind: output, shape index: {2}]
  %11 = xla_tuple %s8, %s9, %s10
  %s12 = sld [smem:[#allocation0]]
  $region70: #{tpu_custom_call.1} parent=0
    _
  %s14 = ssub.s32 1, %s12
  %s15 = scalar_select 0, %s14, %s12
  $region1: #{tpu_custom_call.1} parent=0
    #allocation4 [shape = 'u8[8192]{0}', space=vmem, size = 0x2000, scoped, tag = 'input window, operand 2, single buffered']
    #allocation5 [shape = 's32[1]{0}', space=sflag, size = 0x4, scoped, tag = 'scoped memory for tpu_custom_call.1']
    #allocation6 [shape = 's32[1]{0}', space=sflag, size = 0x4, scoped, tag = 'scoped memory for tpu_custom_call.1']
    #allocation7 [shape = 'u8[512]{0}', space=vmem, size = 0x400, scoped, tag = 'input window, operand 3, single buffered']
    #allocation8 [shape = 's32[1]{0}', space=sflag, size = 0x4, scoped, tag = 'scoped memory for tpu_custom_call.1']
    #allocation9 [shape = 'u8[512]{0}', space=vmem, size = 0x400, scoped, tag = 'input window, operand 5, single buffered']
    #allocation10 [shape = 'u8[8192]{0}', space=vmem, size = 0x2000, scoped, tag = 'output window, operand 0, single buffered']
    #allocation11 [shape = 'u8[1024]{0}', space=vmem, size = 0x400, scoped, tag = 'output window, operand 1, single buffered']
    #allocation12 [shape = 's32[1]{0}', space=sflag, size = 0x4, scoped, tag = 'scoped memory for tpu_custom_call.1']
    #allocation13 [shape = 'u8[1024]{0}', space=vmem, size = 0x400, scoped, tag = 'output window, operand 2, single buffered']
    %16 = vsyncpa [#allocation5], 0
    %17 = vsyncpa [#allocation8], 0
    %18 = vsyncpa [#allocation6], 0
    %19 = vsyncpa [#allocation12], 0
    // Predicated region
    $region2: #{tpu_custom_call.1} parent=1 // pred_check
      _
    $region3: #{tpu_custom_call.1} parent=1 // pred_check_branch
      %21 = sbr.rel (0) target = $region5
    $region4: #{tpu_custom_call.1} parent=1 // pred_region
      _
    $region5: #{tpu_custom_call.1} parent=1 // pred_fallthru
      _
    // Predicated region
    $region6: #{tpu_custom_call.1} parent=1 // pred_check
      _
    $region7: #{tpu_custom_call.1} parent=1 // pred_check_branch
      %23 = sbr.rel (0) target = $region9
    $region8: #{tpu_custom_call.1} parent=1 // pred_region
      _
    $region9: #{tpu_custom_call.1} parent=1 // pred_fallthru
      _
    // Predicated region
    $region10: #{tpu_custom_call.1} parent=1 // pred_check
      _
    $region11: #{tpu_custom_call.1} parent=1 // pred_check_branch
      %25 = sbr.rel (0) target = $region13
    $region12: #{tpu_custom_call.1} parent=1 // pred_region
      %s27 = ssub.s32 256, 256
      %28 = vsyncadd [#allocation5], %s27
      %s29 = sshll.u32 [#allocation4], 4
      %s30 = int_to_ptr.vmem [resolvable:$true] %s29
      %35 = dma.hbm_to_vmem [thread:$0]  %s2, 256, %s30, [#allocation5], 64, 64, 4
    $region13: #{tpu_custom_call.1} parent=1 // pred_fallthru
      _
    // Predicated region
    $region14: #{tpu_custom_call.1} parent=1 // pred_check
      _
    $region15: #{tpu_custom_call.1} parent=1 // pred_check_branch
      %37 = sbr.rel (0) target = $region17
    $region16: #{tpu_custom_call.1} parent=1 // pred_region
      %s39 = ssub.s32 16, 16
      %40 = vsyncadd [#allocation8], %s39
      %s42 = sshll.u32 [#allocation7], 4
      %s43 = int_to_ptr.vmem [resolvable:$true] %s42
      %45 = dma.hbm_to_vmem [thread:$0]  %s3, 16, %s43, [#allocation8]
    $region17: #{tpu_custom_call.1} parent=1 // pred_fallthru
      _
    // Predicated region
    $region18: #{tpu_custom_call.1} parent=1 // pred_check
      _
    $region19: #{tpu_custom_call.1} parent=1 // pred_check_branch
      %47 = sbr.rel (0) target = $region21
    $region20: #{tpu_custom_call.1} parent=1 // pred_region
      _
    $region21: #{tpu_custom_call.1} parent=1 // pred_fallthru
      _
    // Predicated region
    $region22: #{tpu_custom_call.1} parent=1 // pred_check
      _
    $region23: #{tpu_custom_call.1} parent=1 // pred_check_branch
      %49 = sbr.rel (0) target = $region25
    $region24: #{tpu_custom_call.1} parent=1 // pred_region
      %s51 = ssub.s32 16, 16
      %52 = vsyncadd [#allocation8], %s51
      %s54 = sshll.u32 [#allocation9], 4
      %s55 = int_to_ptr.vmem [resolvable:$true] %s54
      %57 = dma.hbm_to_vmem [thread:$0]  %s5, 16, %s55, [#allocation8]
    $region25: #{tpu_custom_call.1} parent=1 // pred_fallthru
      _
    // Predicated region
    $region26: #{tpu_custom_call.1} parent=1 // pred_check
      _
    $region27: #{tpu_custom_call.1} parent=1 // pred_check_branch
      %59 = sbr.rel (0) target = $region29
    $region28: #{tpu_custom_call.1} parent=1 // pred_region
      _
    $region29: #{tpu_custom_call.1} parent=1 // pred_fallthru
      _
    // Predicated region
    $region30: #{tpu_custom_call.1} parent=1 // pred_check
      _
    $region31: #{tpu_custom_call.1} parent=1 // pred_check_branch
      %61 = sbr.rel (0) target = $region33
    $region32: #{tpu_custom_call.1} parent=1 // pred_region
      _
    $region33: #{tpu_custom_call.1} parent=1 // pred_fallthru
      _
    // Predicated region
    $region34: #{tpu_custom_call.1} parent=1 // pred_check
      _
    $region35: #{tpu_custom_call.1} parent=1 // pred_check_branch
      %63 = sbr.rel (0) target = $region37
    $region36: #{tpu_custom_call.1} parent=1 // pred_region
      %64 = dma.done [#allocation5], 256
    $region37: #{tpu_custom_call.1} parent=1 // pred_fallthru
      _
    // Predicated region
    $region38: #{tpu_custom_call.1} parent=1 // pred_check
      _
    $region39: #{tpu_custom_call.1} parent=1 // pred_check_branch
      %66 = sbr.rel (0) target = $region41
    $region40: #{tpu_custom_call.1} parent=1 // pred_region
      %67 = dma.done [#allocation8], 16
    $region41: #{tpu_custom_call.1} parent=1 // pred_fallthru
      _
    // Predicated region
    $region42: #{tpu_custom_call.1} parent=1 // pred_check
      _
    $region43: #{tpu_custom_call.1} parent=1 // pred_check_branch
      %69 = sbr.rel (0) target = $region45
    $region44: #{tpu_custom_call.1} parent=1 // pred_region
      %70 = dma.done [#allocation8], 16
    $region45: #{tpu_custom_call.1} parent=1 // pred_fallthru
      _
    %v72 = vld [vmem:[%s1] sm:$0x3]
    %v73 = vld [vmem:[#allocation4] sm:$0xf]
    %v74 = vld [vmem:[#allocation4 + $0x4] sm:$0xf]
    %v75 = vld [vmem:[#allocation4 + $0x8] sm:$0xf]
    %v76 = vld [vmem:[#allocation4 + $0xc] sm:$0xf]
    %v77 = vld [vmem:[#allocation7] sm:$0x1]
    %v78 = vld [vmem:[%s0] sm:$0x1]
    %v80 = vlaneseq
    %v81 = vshrl.u32 %v80, 7
    %v82 = vsub.s32 0, %v81
    %v83 = vrot.slane %v77, %v82
    %vm85 = vcmask 31744
    %v87 = vsel %vm85, %v78, 0
    %vm89 = vcmask 1041408
    %v91 = vsel %vm89, %v72, 0
    %93 = vmatprep.subr.bf16.mxu0 0
    %94 = vmatpush1.bf16.msra.mxu0 0
    %95 = vmatprep.subr.bf16.mxu0 0
    %96 = vmatpush1.bf16.msra.mxu0 0
    %97 = vmatprep.subr.bf16.mxu0 0
    %98 = vmatpush1.bf16.msra.mxu0 0
    %99 = vmatprep.subr.bf16.mxu0 0
    %100 = vmatpush1.bf16.msra.mxu0 0
    %101 = vmatprep.subr.bf16.mxu0 0
    %102 = vmatpush1.bf16.msra.mxu0 0
    %103 = vmatprep.subr.bf16.mxu0 0
    %104 = vmatpush1.bf16.msra.mxu0 0
    %105 = vmatprep.subr.bf16.mxu0 0
    %106 = vmatpush1.bf16.msra.mxu0 0
    %107 = vmatprep.subr.bf16.mxu0 0
    %108 = vmatpush1.bf16.msra.mxu0 %v91
    %109 = vmatprep.subr.bf16.mxu0 0
    %110 = vmatpush2.bf16.msra.mxu0 0
    %111 = vmatprep.subr.bf16.mxu0 0
    %112 = vmatpush2.bf16.msra.mxu0 0
    %113 = vmatprep.subr.bf16.mxu0 0
    %114 = vmatpush2.bf16.msra.mxu0 0
    %115 = vmatprep.subr.bf16.mxu0 0
    %116 = vmatpush2.bf16.msra.mxu0 0
    %117 = vmatprep.subr.bf16.mxu0 0
    %118 = vmatpush2.bf16.msra.mxu0 0
    %119 = vmatprep.subr.bf16.mxu0 0
    %120 = vmatpush2.bf16.msra.mxu0 0
    %121 = vmatprep.subr.bf16.mxu0 0
    %122 = vmatpush2.bf16.msra.mxu0 0
    %123 = vmatprep.subr.bf16.mxu0 0
    %124 = vmatpush2.bf16.msra.mxu0 0
    %125 = vmatprep.mubr.bf16.mxu0 0
    %126 = vmatmul.mubr.bf16.gmra.mxu0 %v87
    %v127 = vpop.f32.mrf.mxu0
    %v128 = vadd.f32 %v83, %v127
    %v129 = vpop.f32.mrf.mxu0
    %v130 = vpop.f32.mrf.mxu0
    %v131 = vpop.f32.mrf.mxu0
    %132 = vdwg.mxu0
    %133 = vst [vmem:[#allocation2] sm:$0x3] %v128
    %s134 = scalar_lea.vmem %s0, 1
    %v135 = vld [vmem:[%s134] sm:$0x1]
    %v137 = vsel %vm85, %v135, 0
    %139 = vmatprep.subr.bf16.mxu0 0
    %140 = vmatpush1.bf16.msra.mxu0 0
    %141 = vmatprep.subr.bf16.mxu0 0
    %142 = vmatpush1.bf16.msra.mxu0 0
    %143 = vmatprep.subr.bf16.mxu0 0
    %144 = vmatpush1.bf16.msra.mxu0 0
    %145 = vmatprep.subr.bf16.mxu0 0
    %146 = vmatpush1.bf16.msra.mxu0 0
    %147 = vmatprep.subr.bf16.mxu0 0
    %148 = vmatpush1.bf16.msra.mxu0 0
    %149 = vmatprep.subr.bf16.mxu0 0
    %150 = vmatpush1.bf16.msra.mxu0 0
    %151 = vmatprep.subr.bf16.mxu0 0
    %152 = vmatpush1.bf16.msra.mxu0 0
    %153 = vmatprep.subr.bf16.mxu0 0
    %154 = vmatpush1.bf16.msra.mxu0 %v91
    %155 = vmatprep.subr.bf16.mxu0 0
    %156 = vmatpush2.bf16.msra.mxu0 0
    %157 = vmatprep.subr.bf16.mxu0 0
    %158 = vmatpush2.bf16.msra.mxu0 0
    %159 = vmatprep.subr.bf16.mxu0 0
    %160 = vmatpush2.bf16.msra.mxu0 0
    %161 = vmatprep.subr.bf16.mxu0 0
    %162 = vmatpush2.bf16.msra.mxu0 0
    %163 = vmatprep.subr.bf16.mxu0 0
    %164 = vmatpush2.bf16.msra.mxu0 0
    %165 = vmatprep.subr.bf16.mxu0 0
    %166 = vmatpush2.bf16.msra.mxu0 0
    %167 = vmatprep.subr.bf16.mxu0 0
    %168 = vmatpush2.bf16.msra.mxu0 0
    %169 = vmatprep.subr.bf16.mxu0 0
    %170 = vmatpush2.bf16.msra.mxu0 0
    %171 = vmatprep.mubr.bf16.mxu0 0
    %172 = vmatmul.mubr.bf16.gmra.mxu0 %v137
    %v173 = vpop.f32.mrf.mxu0
    %v174 = vadd.f32 %v83, %v173
    %v175 = vpop.f32.mrf.mxu0
    %v176 = vpop.f32.mrf.mxu0
    %v177 = vpop.f32.mrf.mxu0
    %178 = vdwg.mxu0
    %s179 = scalar_lea.vmem [#allocation2], 2
    %180 = vst [vmem:[%s179] sm:$0x3] %v174
    %s181 = scalar_lea.vmem %s0, 2
    %v182 = vld [vmem:[%s181] sm:$0x1]
    %v184 = vsel %vm85, %v182, 0
    %186 = vmatprep.subr.bf16.mxu0 0
    %187 = vmatpush1.bf16.msra.mxu0 0
    %188 = vmatprep.subr.bf16.mxu0 0
    %189 = vmatpush1.bf16.msra.mxu0 0
    %190 = vmatprep.subr.bf16.mxu0 0
    %191 = vmatpush1.bf16.msra.mxu0 0
    %192 = vmatprep.subr.bf16.mxu0 0
    %193 = vmatpush1.bf16.msra.mxu0 0
    %194 = vmatprep.subr.bf16.mxu0 0
    %195 = vmatpush1.bf16.msra.mxu0 0
    %196 = vmatprep.subr.bf16.mxu0 0
    %197 = vmatpush1.bf16.msra.mxu0 0
    %198 = vmatprep.subr.bf16.mxu0 0
    %199 = vmatpush1.bf16.msra.mxu0 0
    %200 = vmatprep.subr.bf16.mxu0 0
    %201 = vmatpush1.bf16.msra.mxu0 %v91
    %202 = vmatprep.subr.bf16.mxu0 0
    %203 = vmatpush2.bf16.msra.mxu0 0
    %204 = vmatprep.subr.bf16.mxu0 0
    %205 = vmatpush2.bf16.msra.mxu0 0
    %206 = vmatprep.subr.bf16.mxu0 0
    %207 = vmatpush2.bf16.msra.mxu0 0
    %208 = vmatprep.subr.bf16.mxu0 0
    %209 = vmatpush2.bf16.msra.mxu0 0
    %210 = vmatprep.subr.bf16.mxu0 0
    %211 = vmatpush2.bf16.msra.mxu0 0
    %212 = vmatprep.subr.bf16.mxu0 0
    %213 = vmatpush2.bf16.msra.mxu0 0
    %214 = vmatprep.subr.bf16.mxu0 0
    %215 = vmatpush2.bf16.msra.mxu0 0
    %216 = vmatprep.subr.bf16.mxu0 0
    %217 = vmatpush2.bf16.msra.mxu0 0
    %218 = vmatprep.mubr.bf16.mxu0 0
    %219 = vmatmul.mubr.bf16.gmra.mxu0 %v184
    %v220 = vpop.f32.mrf.mxu0
    %v221 = vadd.f32 %v83, %v220
    %v222 = vpop.f32.mrf.mxu0
    %v223 = vpop.f32.mrf.mxu0
    %v224 = vpop.f32.mrf.mxu0
    %225 = vdwg.mxu0
    %s226 = scalar_lea.vmem [#allocation2], 4
    %227 = vst [vmem:[%s226] sm:$0x3] %v221
    %s228 = scalar_lea.vmem %s0, 3
    %v229 = vld [vmem:[%s228] sm:$0x1]
    %v231 = vsel %vm85, %v229, 0
    %233 = vmatprep.subr.bf16.mxu0 0
    %234 = vmatpush1.bf16.msra.mxu0 0
    %235 = vmatprep.subr.bf16.mxu0 0
    %236 = vmatpush1.bf16.msra.mxu0 0
    %237 = vmatprep.subr.bf16.mxu0 0
    %238 = vmatpush1.bf16.msra.mxu0 0
    %239 = vmatprep.subr.bf16.mxu0 0
    %240 = vmatpush1.bf16.msra.mxu0 0
    %241 = vmatprep.subr.bf16.mxu0 0
    %242 = vmatpush1.bf16.msra.mxu0 0
    %243 = vmatprep.subr.bf16.mxu0 0
    %244 = vmatpush1.bf16.msra.mxu0 0
    %245 = vmatprep.subr.bf16.mxu0 0
    %246 = vmatpush1.bf16.msra.mxu0 0
    %247 = vmatprep.subr.bf16.mxu0 0
    %248 = vmatpush1.bf16.msra.mxu0 %v91
    %249 = vmatprep.subr.bf16.mxu0 0
    %250 = vmatpush2.bf16.msra.mxu0 0
    %251 = vmatprep.subr.bf16.mxu0 0
    %252 = vmatpush2.bf16.msra.mxu0 0
    %253 = vmatprep.subr.bf16.mxu0 0
    %254 = vmatpush2.bf16.msra.mxu0 0
    %255 = vmatprep.subr.bf16.mxu0 0
    %256 = vmatpush2.bf16.msra.mxu0 0
    %257 = vmatprep.subr.bf16.mxu0 0
    %258 = vmatpush2.bf16.msra.mxu0 0
    %259 = vmatprep.subr.bf16.mxu0 0
    %260 = vmatpush2.bf16.msra.mxu0 0
    %261 = vmatprep.subr.bf16.mxu0 0
    %262 = vmatpush2.bf16.msra.mxu0 0
    %263 = vmatprep.subr.bf16.mxu0 0
    %264 = vmatpush2.bf16.msra.mxu0 0
    %265 = vmatprep.mubr.bf16.mxu0 0
    %266 = vmatmul.mubr.bf16.gmra.mxu0 %v231
    %v267 = vpop.f32.mrf.mxu0
    %v268 = vadd.f32 %v83, %v267
    %v269 = vpop.f32.mrf.mxu0
    %v270 = vpop.f32.mrf.mxu0
    %v271 = vpop.f32.mrf.mxu0
    %272 = vdwg.mxu0
    %s273 = scalar_lea.vmem [#allocation2], 6
    %274 = vst [vmem:[%s273] sm:$0x3] %v268
    %s275 = scalar_lea.vmem %s0, 4
    %v276 = vld [vmem:[%s275] sm:$0x1]
    %v278 = vsel %vm85, %v276, 0
    %280 = vmatprep.subr.bf16.mxu0 0
    %281 = vmatpush1.bf16.msra.mxu0 0
    %282 = vmatprep.subr.bf16.mxu0 0
    %283 = vmatpush1.bf16.msra.mxu0 0
    %284 = vmatprep.subr.bf16.mxu0 0
    %285 = vmatpush1.bf16.msra.mxu0 0
    %286 = vmatprep.subr.bf16.mxu0 0
    %287 = vmatpush1.bf16.msra.mxu0 0
    %288 = vmatprep.subr.bf16.mxu0 0
    %289 = vmatpush1.bf16.msra.mxu0 0
    %290 = vmatprep.subr.bf16.mxu0 0
    %291 = vmatpush1.bf16.msra.mxu0 0
    %292 = vmatprep.subr.bf16.mxu0 0
    %293 = vmatpush1.bf16.msra.mxu0 0
    %294 = vmatprep.subr.bf16.mxu0 0
    %295 = vmatpush1.bf16.msra.mxu0 %v91
    %296 = vmatprep.subr.bf16.mxu0 0
    %297 = vmatpush2.bf16.msra.mxu0 0
    %298 = vmatprep.subr.bf16.mxu0 0
    %299 = vmatpush2.bf16.msra.mxu0 0
    %300 = vmatprep.subr.bf16.mxu0 0
    %301 = vmatpush2.bf16.msra.mxu0 0
    %302 = vmatprep.subr.bf16.mxu0 0
    %303 = vmatpush2.bf16.msra.mxu0 0
    %304 = vmatprep.subr.bf16.mxu0 0
    %305 = vmatpush2.bf16.msra.mxu0 0
    %306 = vmatprep.subr.bf16.mxu0 0
    %307 = vmatpush2.bf16.msra.mxu0 0
    %308 = vmatprep.subr.bf16.mxu0 0
    %309 = vmatpush2.bf16.msra.mxu0 0
    %310 = vmatprep.subr.bf16.mxu0 0
    %311 = vmatpush2.bf16.msra.mxu0 0
    %312 = vmatprep.mubr.bf16.mxu0 0
    %313 = vmatmul.mubr.bf16.gmra.mxu0 %v278
    %v314 = vpop.f32.mrf.mxu0
    %v315 = vadd.f32 %v83, %v314
    %v316 = vpop.f32.mrf.mxu0
    %v317 = vpop.f32.mrf.mxu0
    %v318 = vpop.f32.mrf.mxu0
    %319 = vdwg.mxu0
    %s320 = scalar_lea.vmem [#allocation2], 8
    %321 = vst [vmem:[%s320] sm:$0x3] %v315
    %s322 = scalar_lea.vmem %s0, 5
    %v323 = vld [vmem:[%s322] sm:$0x1]
    %v325 = vsel %vm85, %v323, 0
    %327 = vmatprep.subr.bf16.mxu0 0
    %328 = vmatpush1.bf16.msra.mxu0 0
    %329 = vmatprep.subr.bf16.mxu0 0
    %330 = vmatpush1.bf16.msra.mxu0 0
    %331 = vmatprep.subr.bf16.mxu0 0
    %332 = vmatpush1.bf16.msra.mxu0 0
    %333 = vmatprep.subr.bf16.mxu0 0
    %334 = vmatpush1.bf16.msra.mxu0 0
    %335 = vmatprep.subr.bf16.mxu0 0
    %336 = vmatpush1.bf16.msra.mxu0 0
    %337 = vmatprep.subr.bf16.mxu0 0
    %338 = vmatpush1.bf16.msra.mxu0 0
    %339 = vmatprep.subr.bf16.mxu0 0
    %340 = vmatpush1.bf16.msra.mxu0 0
    %341 = vmatprep.subr.bf16.mxu0 0
    %342 = vmatpush1.bf16.msra.mxu0 %v91
    %343 = vmatprep.subr.bf16.mxu0 0
    %344 = vmatpush2.bf16.msra.mxu0 0
    %345 = vmatprep.subr.bf16.mxu0 0
    %346 = vmatpush2.bf16.msra.mxu0 0
    %347 = vmatprep.subr.bf16.mxu0 0
    %348 = vmatpush2.bf16.msra.mxu0 0
    %349 = vmatprep.subr.bf16.mxu0 0
    %350 = vmatpush2.bf16.msra.mxu0 0
    %351 = vmatprep.subr.bf16.mxu0 0
    %352 = vmatpush2.bf16.msra.mxu0 0
    %353 = vmatprep.subr.bf16.mxu0 0
    %354 = vmatpush2.bf16.msra.mxu0 0
    %355 = vmatprep.subr.bf16.mxu0 0
    %356 = vmatpush2.bf16.msra.mxu0 0
    %357 = vmatprep.subr.bf16.mxu0 0
    %358 = vmatpush2.bf16.msra.mxu0 0
    %359 = vmatprep.mubr.bf16.mxu0 0
    %360 = vmatmul.mubr.bf16.gmra.mxu0 %v325
    %v361 = vpop.f32.mrf.mxu0
    %v362 = vadd.f32 %v83, %v361
    %v363 = vpop.f32.mrf.mxu0
    %v364 = vpop.f32.mrf.mxu0
    %v365 = vpop.f32.mrf.mxu0
    %366 = vdwg.mxu0
    %s367 = scalar_lea.vmem [#allocation2], 10
    %368 = vst [vmem:[%s367] sm:$0x3] %v362
    %s369 = scalar_lea.vmem %s0, 6
    %v370 = vld [vmem:[%s369] sm:$0x1]
    %v372 = vsel %vm85, %v370, 0
    %374 = vmatprep.subr.bf16.mxu0 0
    %375 = vmatpush1.bf16.msra.mxu0 0
    %376 = vmatprep.subr.bf16.mxu0 0
    %377 = vmatpush1.bf16.msra.mxu0 0
    %378 = vmatprep.subr.bf16.mxu0 0
    %379 = vmatpush1.bf16.msra.mxu0 0
    %380 = vmatprep.subr.bf16.mxu0 0
    %381 = vmatpush1.bf16.msra.mxu0 0
    %382 = vmatprep.subr.bf16.mxu0 0
    %383 = vmatpush1.bf16.msra.mxu0 0
    %384 = vmatprep.subr.bf16.mxu0 0
    %385 = vmatpush1.bf16.msra.mxu0 0
    %386 = vmatprep.subr.bf16.mxu0 0
    %387 = vmatpush1.bf16.msra.mxu0 0
    %388 = vmatprep.subr.bf16.mxu0 0
    %389 = vmatpush1.bf16.msra.mxu0 %v91
    %390 = vmatprep.subr.bf16.mxu0 0
    %391 = vmatpush2.bf16.msra.mxu0 0
    %392 = vmatprep.subr.bf16.mxu0 0
    %393 = vmatpush2.bf16.msra.mxu0 0
    %394 = vmatprep.subr.bf16.mxu0 0
    %395 = vmatpush2.bf16.msra.mxu0 0
    %396 = vmatprep.subr.bf16.mxu0 0
    %397 = vmatpush2.bf16.msra.mxu0 0
    %398 = vmatprep.subr.bf16.mxu0 0
    %399 = vmatpush2.bf16.msra.mxu0 0
    %400 = vmatprep.subr.bf16.mxu0 0
    %401 = vmatpush2.bf16.msra.mxu0 0
    %402 = vmatprep.subr.bf16.mxu0 0
    %403 = vmatpush2.bf16.msra.mxu0 0
    %404 = vmatprep.subr.bf16.mxu0 0
    %405 = vmatpush2.bf16.msra.mxu0 0
    %406 = vmatprep.mubr.bf16.mxu0 0
    %407 = vmatmul.mubr.bf16.gmra.mxu0 %v372
    %v408 = vpop.f32.mrf.mxu0
    %v409 = vadd.f32 %v83, %v408
    %v410 = vpop.f32.mrf.mxu0
    %v411 = vpop.f32.mrf.mxu0
    %v412 = vpop.f32.mrf.mxu0
    %413 = vdwg.mxu0
    %s414 = scalar_lea.vmem [#allocation2], 12
    %415 = vst [vmem:[%s414] sm:$0x3] %v409
    %s416 = scalar_lea.vmem %s0, 7
    %v417 = vld [vmem:[%s416] sm:$0x1]
    %v419 = vsel %vm85, %v417, 0
    %421 = vmatprep.subr.bf16.mxu0 0
    %422 = vmatpush1.bf16.msra.mxu0 0
    %423 = vmatprep.subr.bf16.mxu0 0
    %424 = vmatpush1.bf16.msra.mxu0 0
    %425 = vmatprep.subr.bf16.mxu0 0
    %426 = vmatpush1.bf16.msra.mxu0 0
    %427 = vmatprep.subr.bf16.mxu0 0
    %428 = vmatpush1.bf16.msra.mxu0 0
    %429 = vmatprep.subr.bf16.mxu0 0
    %430 = vmatpush1.bf16.msra.mxu0 0
    %431 = vmatprep.subr.bf16.mxu0 0
    %432 = vmatpush1.bf16.msra.mxu0 0
    %433 = vmatprep.subr.bf16.mxu0 0
    %434 = vmatpush1.bf16.msra.mxu0 0
    %435 = vmatprep.subr.bf16.mxu0 0
    %436 = vmatpush1.bf16.msra.mxu0 %v91
    %437 = vmatprep.subr.bf16.mxu0 0
    %438 = vmatpush2.bf16.msra.mxu0 0
    %439 = vmatprep.subr.bf16.mxu0 0
    %440 = vmatpush2.bf16.msra.mxu0 0
    %441 = vmatprep.subr.bf16.mxu0 0
    %442 = vmatpush2.bf16.msra.mxu0 0
    %443 = vmatprep.subr.bf16.mxu0 0
    %444 = vmatpush2.bf16.msra.mxu0 0
    %445 = vmatprep.subr.bf16.mxu0 0
    %446 = vmatpush2.bf16.msra.mxu0 0
    %447 = vmatprep.subr.bf16.mxu0 0
    %448 = vmatpush2.bf16.msra.mxu0 0
    %449 = vmatprep.subr.bf16.mxu0 0
    %450 = vmatpush2.bf16.msra.mxu0 0
    %451 = vmatprep.subr.bf16.mxu0 0
    %452 = vmatpush2.bf16.msra.mxu0 0
    %453 = vmatprep.mubr.bf16.mxu0 0
    %454 = vmatmul.mubr.bf16.gmra.mxu0 %v419
    %v455 = vpop.f32.mrf.mxu0
    %v456 = vadd.f32 %v83, %v455
    %v457 = vpop.f32.mrf.mxu0
    %v458 = vpop.f32.mrf.mxu0
    %v459 = vpop.f32.mrf.mxu0
    %460 = vdwg.mxu0
    %s461 = scalar_lea.vmem [#allocation2], 14
    %462 = vst [vmem:[%s461] sm:$0x3] %v456
    %v463 = vld [vmem:[%s6] sm:$0x3]
    %v464 = vld [vmem:[%s7] sm:$0x3]
    %v465 = vld [vmem:[#allocation2] sm:$0x3]
    %v466 = vpack.c.bf16 %v463, %v463
    %v471 = vunpack.c.l.b16 %v73
    %v472 = vunpack.c.l.b16 %v74
    %v473 = vunpack.c.l.b16 %v75
    %v474 = vunpack.c.l.b16 %v76
    %v475 = vpack.c.b16 %v472, %v471
    %v476 = vpack.c.b16 %v474, %v473
    %vm479 = vcmask 261120
    %v481 = vsel %vm479, %v466, 0
    %483 = vmatprep.subr.bf16.mxu0 0
    %484 = vmatpush1.bf16.msra.mxu0 0
    %485 = vmatprep.subr.bf16.mxu0 0
    %486 = vmatpush1.bf16.msra.mxu0 0
    %487 = vmatprep.subr.bf16.mxu0 0
    %488 = vmatpush1.bf16.msra.mxu0 0
    %489 = vmatprep.subr.bf16.mxu0 0
    %490 = vmatpush1.bf16.msra.mxu0 0
    %491 = vmatprep.subr.bf16.mxu0 0
    %492 = vmatpush1.bf16.msra.mxu0 0
    %493 = vmatprep.subr.bf16.mxu0 0
    %494 = vmatpush1.bf16.msra.mxu0 0
    %495 = vmatprep.subr.bf16.mxu0 0
    %496 = vmatpush1.bf16.msra.mxu0 %v476
    %497 = vmatprep.subr.bf16.mxu0 0
    %498 = vmatpush1.bf16.msra.mxu0 %v475
    %499 = vmatprep.subr.bf16.mxu0 0
    %500 = vmatpush2.bf16.msra.mxu0 0
    %501 = vmatprep.subr.bf16.mxu0 0
    %502 = vmatpush2.bf16.msra.mxu0 0
    %503 = vmatprep.subr.bf16.mxu0 0
    %504 = vmatpush2.bf16.msra.mxu0 0
    %505 = vmatprep.subr.bf16.mxu0 0
    %506 = vmatpush2.bf16.msra.mxu0 0
    %507 = vmatprep.subr.bf16.mxu0 0
    %508 = vmatpush2.bf16.msra.mxu0 0
    %509 = vmatprep.subr.bf16.mxu0 0
    %510 = vmatpush2.bf16.msra.mxu0 0
    %511 = vmatprep.subr.bf16.mxu0 0
    %512 = vmatpush2.bf16.msra.mxu0 0
    %513 = vmatprep.subr.bf16.mxu0 0
    %514 = vmatpush2.bf16.msra.mxu0 0
    %515 = vmatprep.mubr.bf16.mxu0 0
    %516 = vmatmul.mubr.bf16.gmra.mxu0 %v481
    %v517 = vpop.f32.mrf.mxu0
    %v518 = vadd.f32 0.0, %v517
    %v519 = vpop.f32.mrf.mxu0
    %v520 = vpop.f32.mrf.mxu0
    %v521 = vpop.f32.mrf.mxu0
    %522 = vdwg.mxu0
    %v523 = vadd.f32 %v465, %v518
    %v524 = vxor.u32 %v523, 2147483648
    %v525 = vmul.f32 %v524, 1.442695
    %v526 = vpow.pop %v525
    %v527 = vadd.f32 %v526, 1.0
    %v528 = vrcp.pop %v527
    %v529 = vmul.f32 1.0, %v528
    %v530 = vtanh.pop %v523
    %532 = vrot.lane.b32.xlu0 %v464, 32
    %v533 = vpop.permute.xlu0 %532
    %v535 = vmul.f32 %v529, %v533
    %537 = vrot.lane.b32.xlu0 %v530, 64
    %v538 = vpop.permute.xlu0 %537
    %v540 = vmul.f32 %v529, %v538
    %542 = vrot.lane.b32.xlu0 %v540, 32
    %v543 = vpop.permute.xlu0 %542
    %v545 = vadd.f32 %v535, %v543
    %v546 = vtanh.pop %v545
    %548 = vrot.lane.b32.xlu0 %v546, 64
    %v549 = vpop.permute.xlu0 %548
    %v551 = vmul.f32 %v529, %v549
    %553 = vrot.lane.b32.xlu0 %v551, 32
    %v554 = vpop.permute.xlu0 %553
    %vm556 = vcmask 254976
    %557 = vst.msk [vmem:[#allocation3] sm:$0x3] %vm556, %v554
    %v558 = vld [vmem:[%s179] sm:$0x3]
    %v559 = vpack.c.bf16 %v551, %v551
    %561 = vrot.lane.b32.xlu0 %v559, 32
    %v562 = vpop.permute.xlu0 %561
    %v564 = vsel %vm479, %v562, 0
    %566 = vmatprep.subr.bf16.mxu0 0
    %567 = vmatpush1.bf16.msra.mxu0 0
    %568 = vmatprep.subr.bf16.mxu0 0
    %569 = vmatpush1.bf16.msra.mxu0 0
    %570 = vmatprep.subr.bf16.mxu0 0
    %571 = vmatpush1.bf16.msra.mxu0 0
    %572 = vmatprep.subr.bf16.mxu0 0
    %573 = vmatpush1.bf16.msra.mxu0 0
    %574 = vmatprep.subr.bf16.mxu0 0
    %575 = vmatpush1.bf16.msra.mxu0 0
    %576 = vmatprep.subr.bf16.mxu0 0
    %577 = vmatpush1.bf16.msra.mxu0 0
    %578 = vmatprep.subr.bf16.mxu0 0
    %579 = vmatpush1.bf16.msra.mxu0 %v476
    %580 = vmatprep.subr.bf16.mxu0 0
    %581 = vmatpush1.bf16.msra.mxu0 %v475
    %582 = vmatprep.subr.bf16.mxu0 0
    %583 = vmatpush2.bf16.msra.mxu0 0
    %584 = vmatprep.subr.bf16.mxu0 0
    %585 = vmatpush2.bf16.msra.mxu0 0
    %586 = vmatprep.subr.bf16.mxu0 0
    %587 = vmatpush2.bf16.msra.mxu0 0
    %588 = vmatprep.subr.bf16.mxu0 0
    %589 = vmatpush2.bf16.msra.mxu0 0
    %590 = vmatprep.subr.bf16.mxu0 0
    %591 = vmatpush2.bf16.msra.mxu0 0
    %592 = vmatprep.subr.bf16.mxu0 0
    %593 = vmatpush2.bf16.msra.mxu0 0
    %594 = vmatprep.subr.bf16.mxu0 0
    %595 = vmatpush2.bf16.msra.mxu0 0
    %596 = vmatprep.subr.bf16.mxu0 0
    %597 = vmatpush2.bf16.msra.mxu0 0
    %598 = vmatprep.mubr.bf16.mxu0 0
    %599 = vmatmul.mubr.bf16.gmra.mxu0 %v564
    %v600 = vpop.f32.mrf.mxu0
    %v601 = vadd.f32 0.0, %v600
    %v602 = vpop.f32.mrf.mxu0
    %v603 = vpop.f32.mrf.mxu0
    %v604 = vpop.f32.mrf.mxu0
    %605 = vdwg.mxu0
    %v606 = vadd.f32 %v558, %v601
    %v607 = vxor.u32 %v606, 2147483648
    %v608 = vmul.f32 %v607, 1.442695
    %v609 = vpow.pop %v608
    %v610 = vadd.f32 %v609, 1.0
    %v611 = vrcp.pop %v610
    %v612 = vmul.f32 1.0, %v611
    %v613 = vtanh.pop %v606
    %v614 = vmul.f32 %v612, %v545
    %616 = vrot.lane.b32.xlu0 %v613, 64
    %v617 = vpop.permute.xlu0 %616
    %v619 = vmul.f32 %v612, %v617
    %621 = vrot.lane.b32.xlu0 %v619, 32
    %v622 = vpop.permute.xlu0 %621
    %v624 = vadd.f32 %v614, %v622
    %v625 = vtanh.pop %v624
    %627 = vrot.lane.b32.xlu0 %v625, 64
    %v628 = vpop.permute.xlu0 %627
    %v630 = vmul.f32 %v612, %v628
    %632 = vrot.lane.b32.xlu0 %v630, 32
    %v633 = vpop.permute.xlu0 %632
    %s635 = scalar_lea.vmem [#allocation3], 2
    %636 = vst.msk [vmem:[%s635] sm:$0x3] %vm556, %v633
    %v637 = vld [vmem:[%s226] sm:$0x3]
    %v638 = vpack.c.bf16 %v630, %v630
    %640 = vrot.lane.b32.xlu0 %v638, 32
    %v641 = vpop.permute.xlu0 %640
    %v643 = vsel %vm479, %v641, 0
    %645 = vmatprep.subr.bf16.mxu0 0
    %646 = vmatpush1.bf16.msra.mxu0 0
    %647 = vmatprep.subr.bf16.mxu0 0
    %648 = vmatpush1.bf16.msra.mxu0 0
    %649 = vmatprep.subr.bf16.mxu0 0
    %650 = vmatpush1.bf16.msra.mxu0 0
    %651 = vmatprep.subr.bf16.mxu0 0
    %652 = vmatpush1.bf16.msra.mxu0 0
    %653 = vmatprep.subr.bf16.mxu0 0
    %654 = vmatpush1.bf16.msra.mxu0 0
    %655 = vmatprep.subr.bf16.mxu0 0
    %656 = vmatpush1.bf16.msra.mxu0 0
    %657 = vmatprep.subr.bf16.mxu0 0
    %658 = vmatpush1.bf16.msra.mxu0 %v476
    %659 = vmatprep.subr.bf16.mxu0 0
    %660 = vmatpush1.bf16.msra.mxu0 %v475
    %661 = vmatprep.subr.bf16.mxu0 0
    %662 = vmatpush2.bf16.msra.mxu0 0
    %663 = vmatprep.subr.bf16.mxu0 0
    %664 = vmatpush2.bf16.msra.mxu0 0
    %665 = vmatprep.subr.bf16.mxu0 0
    %666 = vmatpush2.bf16.msra.mxu0 0
    %667 = vmatprep.subr.bf16.mxu0 0
    %668 = vmatpush2.bf16.msra.mxu0 0
    %669 = vmatprep.subr.bf16.mxu0 0
    %670 = vmatpush2.bf16.msra.mxu0 0
    %671 = vmatprep.subr.bf16.mxu0 0
    %672 = vmatpush2.bf16.msra.mxu0 0
    %673 = vmatprep.subr.bf16.mxu0 0
    %674 = vmatpush2.bf16.msra.mxu0 0
    %675 = vmatprep.subr.bf16.mxu0 0
    %676 = vmatpush2.bf16.msra.mxu0 0
    %677 = vmatprep.mubr.bf16.mxu0 0
    %678 = vmatmul.mubr.bf16.gmra.mxu0 %v643
    %v679 = vpop.f32.mrf.mxu0
    %v680 = vadd.f32 0.0, %v679
    %v681 = vpop.f32.mrf.mxu0
    %v682 = vpop.f32.mrf.mxu0
    %v683 = vpop.f32.mrf.mxu0
    %684 = vdwg.mxu0
    %v685 = vadd.f32 %v637, %v680
    %v686 = vxor.u32 %v685, 2147483648
    %v687 = vmul.f32 %v686, 1.442695
    %v688 = vpow.pop %v687
    %v689 = vadd.f32 %v688, 1.0
    %v690 = vrcp.pop %v689
    %v691 = vmul.f32 1.0, %v690
    %v692 = vtanh.pop %v685
    %v693 = vmul.f32 %v691, %v624
    %695 = vrot.lane.b32.xlu0 %v692, 64
    %v696 = vpop.permute.xlu0 %695
    %v698 = vmul.f32 %v691, %v696
    %700 = vrot.lane.b32.xlu0 %v698, 32
    %v701 = vpop.permute.xlu0 %700
    %v703 = vadd.f32 %v693, %v701
    %v704 = vtanh.pop %v703
    %706 = vrot.lane.b32.xlu0 %v704, 64
    %v707 = vpop.permute.xlu0 %706
    %v709 = vmul.f32 %v691, %v707
    %711 = vrot.lane.b32.xlu0 %v709, 32
    %v712 = vpop.permute.xlu0 %711
    %s714 = scalar_lea.vmem [#allocation3], 4
    %715 = vst.msk [vmem:[%s714] sm:$0x3] %vm556, %v712
    %v716 = vld [vmem:[%s273] sm:$0x3]
    %v717 = vpack.c.bf16 %v709, %v709
    %719 = vrot.lane.b32.xlu0 %v717, 32
    %v720 = vpop.permute.xlu0 %719
    %v722 = vsel %vm479, %v720, 0
    %724 = vmatprep.subr.bf16.mxu0 0
    %725 = vmatpush1.bf16.msra.mxu0 0
    %726 = vmatprep.subr.bf16.mxu0 0
    %727 = vmatpush1.bf16.msra.mxu0 0
    %728 = vmatprep.subr.bf16.mxu0 0
    %729 = vmatpush1.bf16.msra.mxu0 0
    %730 = vmatprep.subr.bf16.mxu0 0
    %731 = vmatpush1.bf16.msra.mxu0 0
    %732 = vmatprep.subr.bf16.mxu0 0
    %733 = vmatpush1.bf16.msra.mxu0 0
    %734 = vmatprep.subr.bf16.mxu0 0
    %735 = vmatpush1.bf16.msra.mxu0 0
    %736 = vmatprep.subr.bf16.mxu0 0
    %737 = vmatpush1.bf16.msra.mxu0 %v476
    %738 = vmatprep.subr.bf16.mxu0 0
    %739 = vmatpush1.bf16.msra.mxu0 %v475
    %740 = vmatprep.subr.bf16.mxu0 0
    %741 = vmatpush2.bf16.msra.mxu0 0
    %742 = vmatprep.subr.bf16.mxu0 0
    %743 = vmatpush2.bf16.msra.mxu0 0
    %744 = vmatprep.subr.bf16.mxu0 0
    %745 = vmatpush2.bf16.msra.mxu0 0
    %746 = vmatprep.subr.bf16.mxu0 0
    %747 = vmatpush2.bf16.msra.mxu0 0
    %748 = vmatprep.subr.bf16.mxu0 0
    %749 = vmatpush2.bf16.msra.mxu0 0
    %750 = vmatprep.subr.bf16.mxu0 0
    %751 = vmatpush2.bf16.msra.mxu0 0
    %752 = vmatprep.subr.bf16.mxu0 0
    %753 = vmatpush2.bf16.msra.mxu0 0
    %754 = vmatprep.subr.bf16.mxu0 0
    %755 = vmatpush2.bf16.msra.mxu0 0
    %756 = vmatprep.mubr.bf16.mxu0 0
    %757 = vmatmul.mubr.bf16.gmra.mxu0 %v722
    %v758 = vpop.f32.mrf.mxu0
    %v759 = vadd.f32 0.0, %v758
    %v760 = vpop.f32.mrf.mxu0
    %v761 = vpop.f32.mrf.mxu0
    %v762 = vpop.f32.mrf.mxu0
    %763 = vdwg.mxu0
    %v764 = vadd.f32 %v716, %v759
    %v765 = vxor.u32 %v764, 2147483648
    %v766 = vmul.f32 %v765, 1.442695
    %v767 = vpow.pop %v766
    %v768 = vadd.f32 %v767, 1.0
    %v769 = vrcp.pop %v768
    %v770 = vmul.f32 1.0, %v769
    %v771 = vtanh.pop %v764
    %v772 = vmul.f32 %v770, %v703
    %774 = vrot.lane.b32.xlu0 %v771, 64
    %v775 = vpop.permute.xlu0 %774
    %v777 = vmul.f32 %v770, %v775
    %779 = vrot.lane.b32.xlu0 %v777, 32
    %v780 = vpop.permute.xlu0 %779
    %v782 = vadd.f32 %v772, %v780
    %v783 = vtanh.pop %v782
    %785 = vrot.lane.b32.xlu0 %v783, 64
    %v786 = vpop.permute.xlu0 %785
    %v788 = vmul.f32 %v770, %v786
    %790 = vrot.lane.b32.xlu0 %v788, 32
    %v791 = vpop.permute.xlu0 %790
    %s793 = scalar_lea.vmem [#allocation3], 6
    %794 = vst.msk [vmem:[%s793] sm:$0x3] %vm556, %v791
    %v795 = vld [vmem:[%s320] sm:$0x3]
    %v796 = vpack.c.bf16 %v788, %v788
    %798 = vrot.lane.b32.xlu0 %v796, 32
    %v799 = vpop.permute.xlu0 %798
    %v801 = vsel %vm479, %v799, 0
    %803 = vmatprep.subr.bf16.mxu0 0
    %804 = vmatpush1.bf16.msra.mxu0 0
    %805 = vmatprep.subr.bf16.mxu0 0
    %806 = vmatpush1.bf16.msra.mxu0 0
    %807 = vmatprep.subr.bf16.mxu0 0
    %808 = vmatpush1.bf16.msra.mxu0 0
    %809 = vmatprep.subr.bf16.mxu0 0
    %810 = vmatpush1.bf16.msra.mxu0 0
    %811 = vmatprep.subr.bf16.mxu0 0
    %812 = vmatpush1.bf16.msra.mxu0 0
    %813 = vmatprep.subr.bf16.mxu0 0
    %814 = vmatpush1.bf16.msra.mxu0 0
    %815 = vmatprep.subr.bf16.mxu0 0
    %816 = vmatpush1.bf16.msra.mxu0 %v476
    %817 = vmatprep.subr.bf16.mxu0 0
    %818 = vmatpush1.bf16.msra.mxu0 %v475
    %819 = vmatprep.subr.bf16.mxu0 0
    %820 = vmatpush2.bf16.msra.mxu0 0
    %821 = vmatprep.subr.bf16.mxu0 0
    %822 = vmatpush2.bf16.msra.mxu0 0
    %823 = vmatprep.subr.bf16.mxu0 0
    %824 = vmatpush2.bf16.msra.mxu0 0
    %825 = vmatprep.subr.bf16.mxu0 0
    %826 = vmatpush2.bf16.msra.mxu0 0
    %827 = vmatprep.subr.bf16.mxu0 0
    %828 = vmatpush2.bf16.msra.mxu0 0
    %829 = vmatprep.subr.bf16.mxu0 0
    %830 = vmatpush2.bf16.msra.mxu0 0
    %831 = vmatprep.subr.bf16.mxu0 0
    %832 = vmatpush2.bf16.msra.mxu0 0
    %833 = vmatprep.subr.bf16.mxu0 0
    %834 = vmatpush2.bf16.msra.mxu0 0
    %835 = vmatprep.mubr.bf16.mxu0 0
    %836 = vmatmul.mubr.bf16.gmra.mxu0 %v801
    %v837 = vpop.f32.mrf.mxu0
    %v838 = vadd.f32 0.0, %v837
    %v839 = vpop.f32.mrf.mxu0
    %v840 = vpop.f32.mrf.mxu0
    %v841 = vpop.f32.mrf.mxu0
    %842 = vdwg.mxu0
    %v843 = vadd.f32 %v795, %v838
    %v844 = vxor.u32 %v843, 2147483648
    %v845 = vmul.f32 %v844, 1.442695
    %v846 = vpow.pop %v845
    %v847 = vadd.f32 %v846, 1.0
    %v848 = vrcp.pop %v847
    %v849 = vmul.f32 1.0, %v848
    %v850 = vtanh.pop %v843
    %v851 = vmul.f32 %v849, %v782
    %853 = vrot.lane.b32.xlu0 %v850, 64
    %v854 = vpop.permute.xlu0 %853
    %v856 = vmul.f32 %v849, %v854
    %858 = vrot.lane.b32.xlu0 %v856, 32
    %v859 = vpop.permute.xlu0 %858
    %v861 = vadd.f32 %v851, %v859
    %v862 = vtanh.pop %v861
    %864 = vrot.lane.b32.xlu0 %v862, 64
    %v865 = vpop.permute.xlu0 %864
    %v867 = vmul.f32 %v849, %v865
    %869 = vrot.lane.b32.xlu0 %v867, 32
    %v870 = vpop.permute.xlu0 %869
    %s872 = scalar_lea.vmem [#allocation3], 8
    %873 = vst.msk [vmem:[%s872] sm:$0x3] %vm556, %v870
    %v874 = vld [vmem:[%s367] sm:$0x3]
    %v875 = vpack.c.bf16 %v867, %v867
    %877 = vrot.lane.b32.xlu0 %v875, 32
    %v878 = vpop.permute.xlu0 %877
    %v880 = vsel %vm479, %v878, 0
    %882 = vmatprep.subr.bf16.mxu0 0
    %883 = vmatpush1.bf16.msra.mxu0 0
    %884 = vmatprep.subr.bf16.mxu0 0
    %885 = vmatpush1.bf16.msra.mxu0 0
    %886 = vmatprep.subr.bf16.mxu0 0
    %887 = vmatpush1.bf16.msra.mxu0 0
    %888 = vmatprep.subr.bf16.mxu0 0
    %889 = vmatpush1.bf16.msra.mxu0 0
    %890 = vmatprep.subr.bf16.mxu0 0
    %891 = vmatpush1.bf16.msra.mxu0 0
    %892 = vmatprep.subr.bf16.mxu0 0
    %893 = vmatpush1.bf16.msra.mxu0 0
    %894 = vmatprep.subr.bf16.mxu0 0
    %895 = vmatpush1.bf16.msra.mxu0 %v476
    %896 = vmatprep.subr.bf16.mxu0 0
    %897 = vmatpush1.bf16.msra.mxu0 %v475
    %898 = vmatprep.subr.bf16.mxu0 0
    %899 = vmatpush2.bf16.msra.mxu0 0
    %900 = vmatprep.subr.bf16.mxu0 0
    %901 = vmatpush2.bf16.msra.mxu0 0
    %902 = vmatprep.subr.bf16.mxu0 0
    %903 = vmatpush2.bf16.msra.mxu0 0
    %904 = vmatprep.subr.bf16.mxu0 0
    %905 = vmatpush2.bf16.msra.mxu0 0
    %906 = vmatprep.subr.bf16.mxu0 0
    %907 = vmatpush2.bf16.msra.mxu0 0
    %908 = vmatprep.subr.bf16.mxu0 0
    %909 = vmatpush2.bf16.msra.mxu0 0
    %910 = vmatprep.subr.bf16.mxu0 0
    %911 = vmatpush2.bf16.msra.mxu0 0
    %912 = vmatprep.subr.bf16.mxu0 0
    %913 = vmatpush2.bf16.msra.mxu0 0
    %914 = vmatprep.mubr.bf16.mxu0 0
    %915 = vmatmul.mubr.bf16.gmra.mxu0 %v880
    %v916 = vpop.f32.mrf.mxu0
    %v917 = vadd.f32 0.0, %v916
    %v918 = vpop.f32.mrf.mxu0
    %v919 = vpop.f32.mrf.mxu0
    %v920 = vpop.f32.mrf.mxu0
    %921 = vdwg.mxu0
    %v922 = vadd.f32 %v874, %v917
    %v923 = vxor.u32 %v922, 2147483648
    %v924 = vmul.f32 %v923, 1.442695
    %v925 = vpow.pop %v924
    %v926 = vadd.f32 %v925, 1.0
    %v927 = vrcp.pop %v926
    %v928 = vmul.f32 1.0, %v927
    %v929 = vtanh.pop %v922
    %v930 = vmul.f32 %v928, %v861
    %932 = vrot.lane.b32.xlu0 %v929, 64
    %v933 = vpop.permute.xlu0 %932
    %v935 = vmul.f32 %v928, %v933
    %937 = vrot.lane.b32.xlu0 %v935, 32
    %v938 = vpop.permute.xlu0 %937
    %v940 = vadd.f32 %v930, %v938
    %v941 = vtanh.pop %v940
    %943 = vrot.lane.b32.xlu0 %v941, 64
    %v944 = vpop.permute.xlu0 %943
    %v946 = vmul.f32 %v928, %v944
    %948 = vrot.lane.b32.xlu0 %v946, 32
    %v949 = vpop.permute.xlu0 %948
    %s951 = scalar_lea.vmem [#allocation3], 10
    %952 = vst.msk [vmem:[%s951] sm:$0x3] %vm556, %v949
    %v953 = vld [vmem:[%s414] sm:$0x3]
    %v954 = vpack.c.bf16 %v946, %v946
    %956 = vrot.lane.b32.xlu0 %v954, 32
    %v957 = vpop.permute.xlu0 %956
    %v959 = vsel %vm479, %v957, 0
    %961 = vmatprep.subr.bf16.mxu0 0
    %962 = vmatpush1.bf16.msra.mxu0 0
    %963 = vmatprep.subr.bf16.mxu0 0
    %964 = vmatpush1.bf16.msra.mxu0 0
    %965 = vmatprep.subr.bf16.mxu0 0
    %966 = vmatpush1.bf16.msra.mxu0 0
    %967 = vmatprep.subr.bf16.mxu0 0
    %968 = vmatpush1.bf16.msra.mxu0 0
    %969 = vmatprep.subr.bf16.mxu0 0
    %970 = vmatpush1.bf16.msra.mxu0 0
    %971 = vmatprep.subr.bf16.mxu0 0
    %972 = vmatpush1.bf16.msra.mxu0 0
    %973 = vmatprep.subr.bf16.mxu0 0
    %974 = vmatpush1.bf16.msra.mxu0 %v476
    %975 = vmatprep.subr.bf16.mxu0 0
    %976 = vmatpush1.bf16.msra.mxu0 %v475
    %977 = vmatprep.subr.bf16.mxu0 0
    %978 = vmatpush2.bf16.msra.mxu0 0
    %979 = vmatprep.subr.bf16.mxu0 0
    %980 = vmatpush2.bf16.msra.mxu0 0
    %981 = vmatprep.subr.bf16.mxu0 0
    %982 = vmatpush2.bf16.msra.mxu0 0
    %983 = vmatprep.subr.bf16.mxu0 0
    %984 = vmatpush2.bf16.msra.mxu0 0
    %985 = vmatprep.subr.bf16.mxu0 0
    %986 = vmatpush2.bf16.msra.mxu0 0
    %987 = vmatprep.subr.bf16.mxu0 0
    %988 = vmatpush2.bf16.msra.mxu0 0
    %989 = vmatprep.subr.bf16.mxu0 0
    %990 = vmatpush2.bf16.msra.mxu0 0
    %991 = vmatprep.subr.bf16.mxu0 0
    %992 = vmatpush2.bf16.msra.mxu0 0
    %993 = vmatprep.mubr.bf16.mxu0 0
    %994 = vmatmul.mubr.bf16.gmra.mxu0 %v959
    %v995 = vpop.f32.mrf.mxu0
    %v996 = vadd.f32 0.0, %v995
    %v997 = vpop.f32.mrf.mxu0
    %v998 = vpop.f32.mrf.mxu0
    %v999 = vpop.f32.mrf.mxu0
    %1000 = vdwg.mxu0
    %v1001 = vadd.f32 %v953, %v996
    %v1002 = vxor.u32 %v1001, 2147483648
    %v1003 = vmul.f32 %v1002, 1.442695
    %v1004 = vpow.pop %v1003
    %v1005 = vadd.f32 %v1004, 1.0
    %v1006 = vrcp.pop %v1005
    %v1007 = vmul.f32 1.0, %v1006
    %v1008 = vtanh.pop %v1001
    %v1009 = vmul.f32 %v1007, %v940
    %1011 = vrot.lane.b32.xlu0 %v1008, 64
    %v1012 = vpop.permute.xlu0 %1011
    %v1014 = vmul.f32 %v1007, %v1012
    %1016 = vrot.lane.b32.xlu0 %v1014, 32
    %v1017 = vpop.permute.xlu0 %1016
    %v1019 = vadd.f32 %v1009, %v1017
    %v1020 = vtanh.pop %v1019
    %1022 = vrot.lane.b32.xlu0 %v1020, 64
    %v1023 = vpop.permute.xlu0 %1022
    %v1025 = vmul.f32 %v1007, %v1023
    %1027 = vrot.lane.b32.xlu0 %v1025, 32
    %v1028 = vpop.permute.xlu0 %1027
    %s1030 = scalar_lea.vmem [#allocation3], 12
    %1031 = vst.msk [vmem:[%s1030] sm:$0x3] %vm556, %v1028
    %v1032 = vld [vmem:[%s461] sm:$0x3]
    %v1033 = vpack.c.bf16 %v1025, %v1025
    %1035 = vrot.lane.b32.xlu0 %v1033, 32
    %v1036 = vpop.permute.xlu0 %1035
    %v1038 = vsel %vm479, %v1036, 0
    %1040 = vmatprep.subr.bf16.mxu0 0
    %1041 = vmatpush1.bf16.msra.mxu0 0
    %1042 = vmatprep.subr.bf16.mxu0 0
    %1043 = vmatpush1.bf16.msra.mxu0 0
    %1044 = vmatprep.subr.bf16.mxu0 0
    %1045 = vmatpush1.bf16.msra.mxu0 0
    %1046 = vmatprep.subr.bf16.mxu0 0
    %1047 = vmatpush1.bf16.msra.mxu0 0
    %1048 = vmatprep.subr.bf16.mxu0 0
    %1049 = vmatpush1.bf16.msra.mxu0 0
    %1050 = vmatprep.subr.bf16.mxu0 0
    %1051 = vmatpush1.bf16.msra.mxu0 0
    %1052 = vmatprep.subr.bf16.mxu0 0
    %1053 = vmatpush1.bf16.msra.mxu0 %v476
    %1054 = vmatprep.subr.bf16.mxu0 0
    %1055 = vmatpush1.bf16.msra.mxu0 %v475
    %1056 = vmatprep.subr.bf16.mxu0 0
    %1057 = vmatpush2.bf16.msra.mxu0 0
    %1058 = vmatprep.subr.bf16.mxu0 0
    %1059 = vmatpush2.bf16.msra.mxu0 0
    %1060 = vmatprep.subr.bf16.mxu0 0
    %1061 = vmatpush2.bf16.msra.mxu0 0
    %1062 = vmatprep.subr.bf16.mxu0 0
    %1063 = vmatpush2.bf16.msra.mxu0 0
    %1064 = vmatprep.subr.bf16.mxu0 0
    %1065 = vmatpush2.bf16.msra.mxu0 0
    %1066 = vmatprep.subr.bf16.mxu0 0
    %1067 = vmatpush2.bf16.msra.mxu0 0
    %1068 = vmatprep.subr.bf16.mxu0 0
    %1069 = vmatpush2.bf16.msra.mxu0 0
    %1070 = vmatprep.subr.bf16.mxu0 0
    %1071 = vmatpush2.bf16.msra.mxu0 0
    %1072 = vmatprep.mubr.bf16.mxu0 0
    %1073 = vmatmul.mubr.bf16.gmra.mxu0 %v1038
    %v1074 = vpop.f32.mrf.mxu0
    %v1075 = vadd.f32 0.0, %v1074
    %v1076 = vpop.f32.mrf.mxu0
    %v1077 = vpop.f32.mrf.mxu0
    %v1078 = vpop.f32.mrf.mxu0
    %1079 = vdwg.mxu0
    %v1080 = vadd.f32 %v1032, %v1075
    %v1081 = vxor.u32 %v1080, 2147483648
    %v1082 = vmul.f32 %v1081, 1.442695
    %v1083 = vpow.pop %v1082
    %v1084 = vadd.f32 %v1083, 1.0
    %v1085 = vrcp.pop %v1084
    %v1086 = vmul.f32 1.0, %v1085
    %v1087 = vtanh.pop %v1080
    %v1088 = vmul.f32 %v1086, %v1019
    %1090 = vrot.lane.b32.xlu0 %v1087, 64
    %v1091 = vpop.permute.xlu0 %1090
    %v1093 = vmul.f32 %v1086, %v1091
    %1095 = vrot.lane.b32.xlu0 %v1093, 32
    %v1096 = vpop.permute.xlu0 %1095
    %v1098 = vadd.f32 %v1088, %v1096
    %v1099 = vtanh.pop %v1098
    %1101 = vrot.lane.b32.xlu0 %v1099, 64
    %v1102 = vpop.permute.xlu0 %1101
    %v1104 = vmul.f32 %v1086, %v1102
    %1106 = vrot.lane.b32.xlu0 %v1104, 32
    %v1107 = vpop.permute.xlu0 %1106
    %s1109 = scalar_lea.vmem [#allocation3], 14
    %1110 = vst.msk [vmem:[%s1109] sm:$0x3] %vm556, %v1107
    %1111 = vst.msk [vmem:[#allocation11] sm:$0x3] %vm556, %v1107
    %1113 = vrot.lane.b32.xlu0 %v1098, 96
    %v1114 = vpop.permute.xlu0 %1113
    %1116 = vst.msk [vmem:[#allocation13] sm:$0x3] %vm556, %v1114
    %v1117 = vld [vmem:[%s4] sm:$0xf]
    %v1118 = vld [vmem:[%s4 + $0x4] sm:$0xf]
    %v1119 = vld [vmem:[%s4 + $0x8] sm:$0xf]
    %v1120 = vld [vmem:[%s4 + $0xc] sm:$0xf]
    %v1121 = vld [vmem:[#allocation9] sm:$0x1]
    %v1122 = vld [vmem:[#allocation3] sm:$0x3]
    %v1123 = vpack.c.bf16 %v1122, %v1122
    %v1125 = vlaneseq
    %v1126 = vshrl.u32 %v1125, 7
    %v1127 = vsub.s32 0, %v1126
    %v1128 = vrot.slane %v1121, %v1127
    %v1134 = vunpack.c.l.b16 %v1117
    %v1135 = vunpack.c.l.b16 %v1118
    %v1136 = vunpack.c.l.b16 %v1119
    %v1137 = vunpack.c.l.b16 %v1120
    %v1138 = vpack.c.b16 %v1135, %v1134
    %v1139 = vpack.c.b16 %v1137, %v1136
    %v1143 = vsel %vm479, %v1123, 0
    %1145 = vmatprep.subr.bf16.mxu0 0
    %1146 = vmatpush1.bf16.msra.mxu0 0
    %1147 = vmatprep.subr.bf16.mxu0 0
    %1148 = vmatpush1.bf16.msra.mxu0 0
    %1149 = vmatprep.subr.bf16.mxu0 0
    %1150 = vmatpush1.bf16.msra.mxu0 0
    %1151 = vmatprep.subr.bf16.mxu0 0
    %1152 = vmatpush1.bf16.msra.mxu0 0
    %1153 = vmatprep.subr.bf16.mxu0 0
    %1154 = vmatpush1.bf16.msra.mxu0 0
    %1155 = vmatprep.subr.bf16.mxu0 0
    %1156 = vmatpush1.bf16.msra.mxu0 0
    %1157 = vmatprep.subr.bf16.mxu0 0
    %1158 = vmatpush1.bf16.msra.mxu0 %v1139
    %1159 = vmatprep.subr.bf16.mxu0 0
    %1160 = vmatpush1.bf16.msra.mxu0 %v1138
    %1161 = vmatprep.subr.bf16.mxu0 0
    %1162 = vmatpush2.bf16.msra.mxu0 0
    %1163 = vmatprep.subr.bf16.mxu0 0
    %1164 = vmatpush2.bf16.msra.mxu0 0
    %1165 = vmatprep.subr.bf16.mxu0 0
    %1166 = vmatpush2.bf16.msra.mxu0 0
    %1167 = vmatprep.subr.bf16.mxu0 0
    %1168 = vmatpush2.bf16.msra.mxu0 0
    %1169 = vmatprep.subr.bf16.mxu0 0
    %1170 = vmatpush2.bf16.msra.mxu0 0
    %1171 = vmatprep.subr.bf16.mxu0 0
    %1172 = vmatpush2.bf16.msra.mxu0 0
    %1173 = vmatprep.subr.bf16.mxu0 0
    %1174 = vmatpush2.bf16.msra.mxu0 0
    %1175 = vmatprep.subr.bf16.mxu0 0
    %1176 = vmatpush2.bf16.msra.mxu0 0
    %1177 = vmatprep.mubr.bf16.mxu0 0
    %1178 = vmatmul.mubr.bf16.gmra.mxu0 %v1143
    %v1179 = vpop.f32.mrf.mxu0
    %v1180 = vadd.f32 %v1128, %v1179
    %v1181 = vpop.f32.mrf.mxu0
    %v1182 = vpop.f32.mrf.mxu0
    %v1183 = vpop.f32.mrf.mxu0
    %1184 = vdwg.mxu0
    %1185 = vst [vmem:[#allocation10] sm:$0x3] %v1180
    %v1186 = vld [vmem:[%s635] sm:$0x3]
    %v1187 = vpack.c.bf16 %v1186, %v1186
    %v1189 = vsel %vm479, %v1187, 0
    %1191 = vmatprep.subr.bf16.mxu0 0
    %1192 = vmatpush1.bf16.msra.mxu0 0
    %1193 = vmatprep.subr.bf16.mxu0 0
    %1194 = vmatpush1.bf16.msra.mxu0 0
    %1195 = vmatprep.subr.bf16.mxu0 0
    %1196 = vmatpush1.bf16.msra.mxu0 0
    %1197 = vmatprep.subr.bf16.mxu0 0
    %1198 = vmatpush1.bf16.msra.mxu0 0
    %1199 = vmatprep.subr.bf16.mxu0 0
    %1200 = vmatpush1.bf16.msra.mxu0 0
    %1201 = vmatprep.subr.bf16.mxu0 0
    %1202 = vmatpush1.bf16.msra.mxu0 0
    %1203 = vmatprep.subr.bf16.mxu0 0
    %1204 = vmatpush1.bf16.msra.mxu0 %v1139
    %1205 = vmatprep.subr.bf16.mxu0 0
    %1206 = vmatpush1.bf16.msra.mxu0 %v1138
    %1207 = vmatprep.subr.bf16.mxu0 0
    %1208 = vmatpush2.bf16.msra.mxu0 0
    %1209 = vmatprep.subr.bf16.mxu0 0
    %1210 = vmatpush2.bf16.msra.mxu0 0
    %1211 = vmatprep.subr.bf16.mxu0 0
    %1212 = vmatpush2.bf16.msra.mxu0 0
    %1213 = vmatprep.subr.bf16.mxu0 0
    %1214 = vmatpush2.bf16.msra.mxu0 0
    %1215 = vmatprep.subr.bf16.mxu0 0
    %1216 = vmatpush2.bf16.msra.mxu0 0
    %1217 = vmatprep.subr.bf16.mxu0 0
    %1218 = vmatpush2.bf16.msra.mxu0 0
    %1219 = vmatprep.subr.bf16.mxu0 0
    %1220 = vmatpush2.bf16.msra.mxu0 0
    %1221 = vmatprep.subr.bf16.mxu0 0
    %1222 = vmatpush2.bf16.msra.mxu0 0
    %1223 = vmatprep.mubr.bf16.mxu0 0
    %1224 = vmatmul.mubr.bf16.gmra.mxu0 %v1189
    %v1225 = vpop.f32.mrf.mxu0
    %v1226 = vadd.f32 %v1128, %v1225
    %v1227 = vpop.f32.mrf.mxu0
    %v1228 = vpop.f32.mrf.mxu0
    %v1229 = vpop.f32.mrf.mxu0
    %1230 = vdwg.mxu0
    %s1231 = scalar_lea.vmem [#allocation10], 2
    %1232 = vst [vmem:[%s1231] sm:$0x3] %v1226
    %v1233 = vld [vmem:[%s714] sm:$0x3]
    %v1234 = vpack.c.bf16 %v1233, %v1233
    %v1236 = vsel %vm479, %v1234, 0
    %1238 = vmatprep.subr.bf16.mxu0 0
    %1239 = vmatpush1.bf16.msra.mxu0 0
    %1240 = vmatprep.subr.bf16.mxu0 0
    %1241 = vmatpush1.bf16.msra.mxu0 0
    %1242 = vmatprep.subr.bf16.mxu0 0
    %1243 = vmatpush1.bf16.msra.mxu0 0
    %1244 = vmatprep.subr.bf16.mxu0 0
    %1245 = vmatpush1.bf16.msra.mxu0 0
    %1246 = vmatprep.subr.bf16.mxu0 0
    %1247 = vmatpush1.bf16.msra.mxu0 0
    %1248 = vmatprep.subr.bf16.mxu0 0
    %1249 = vmatpush1.bf16.msra.mxu0 0
    %1250 = vmatprep.subr.bf16.mxu0 0
    %1251 = vmatpush1.bf16.msra.mxu0 %v1139
    %1252 = vmatprep.subr.bf16.mxu0 0
    %1253 = vmatpush1.bf16.msra.mxu0 %v1138
    %1254 = vmatprep.subr.bf16.mxu0 0
    %1255 = vmatpush2.bf16.msra.mxu0 0
    %1256 = vmatprep.subr.bf16.mxu0 0
    %1257 = vmatpush2.bf16.msra.mxu0 0
    %1258 = vmatprep.subr.bf16.mxu0 0
    %1259 = vmatpush2.bf16.msra.mxu0 0
    %1260 = vmatprep.subr.bf16.mxu0 0
    %1261 = vmatpush2.bf16.msra.mxu0 0
    %1262 = vmatprep.subr.bf16.mxu0 0
    %1263 = vmatpush2.bf16.msra.mxu0 0
    %1264 = vmatprep.subr.bf16.mxu0 0
    %1265 = vmatpush2.bf16.msra.mxu0 0
    %1266 = vmatprep.subr.bf16.mxu0 0
    %1267 = vmatpush2.bf16.msra.mxu0 0
    %1268 = vmatprep.subr.bf16.mxu0 0
    %1269 = vmatpush2.bf16.msra.mxu0 0
    %1270 = vmatprep.mubr.bf16.mxu0 0
    %1271 = vmatmul.mubr.bf16.gmra.mxu0 %v1236
    %v1272 = vpop.f32.mrf.mxu0
    %v1273 = vadd.f32 %v1128, %v1272
    %v1274 = vpop.f32.mrf.mxu0
    %v1275 = vpop.f32.mrf.mxu0
    %v1276 = vpop.f32.mrf.mxu0
    %1277 = vdwg.mxu0
    %s1278 = scalar_lea.vmem [#allocation10], 4
    %1279 = vst [vmem:[%s1278] sm:$0x3] %v1273
    %v1280 = vld [vmem:[%s793] sm:$0x3]
    %v1281 = vpack.c.bf16 %v1280, %v1280
    %v1283 = vsel %vm479, %v1281, 0
    %1285 = vmatprep.subr.bf16.mxu0 0
    %1286 = vmatpush1.bf16.msra.mxu0 0
    %1287 = vmatprep.subr.bf16.mxu0 0
    %1288 = vmatpush1.bf16.msra.mxu0 0
    %1289 = vmatprep.subr.bf16.mxu0 0
    %1290 = vmatpush1.bf16.msra.mxu0 0
    %1291 = vmatprep.subr.bf16.mxu0 0
    %1292 = vmatpush1.bf16.msra.mxu0 0
    %1293 = vmatprep.subr.bf16.mxu0 0
    %1294 = vmatpush1.bf16.msra.mxu0 0
    %1295 = vmatprep.subr.bf16.mxu0 0
    %1296 = vmatpush1.bf16.msra.mxu0 0
    %1297 = vmatprep.subr.bf16.mxu0 0
    %1298 = vmatpush1.bf16.msra.mxu0 %v1139
    %1299 = vmatprep.subr.bf16.mxu0 0
    %1300 = vmatpush1.bf16.msra.mxu0 %v1138
    %1301 = vmatprep.subr.bf16.mxu0 0
    %1302 = vmatpush2.bf16.msra.mxu0 0
    %1303 = vmatprep.subr.bf16.mxu0 0
    %1304 = vmatpush2.bf16.msra.mxu0 0
    %1305 = vmatprep.subr.bf16.mxu0 0
    %1306 = vmatpush2.bf16.msra.mxu0 0
    %1307 = vmatprep.subr.bf16.mxu0 0
    %1308 = vmatpush2.bf16.msra.mxu0 0
    %1309 = vmatprep.subr.bf16.mxu0 0
    %1310 = vmatpush2.bf16.msra.mxu0 0
    %1311 = vmatprep.subr.bf16.mxu0 0
    %1312 = vmatpush2.bf16.msra.mxu0 0
    %1313 = vmatprep.subr.bf16.mxu0 0
    %1314 = vmatpush2.bf16.msra.mxu0 0
    %1315 = vmatprep.subr.bf16.mxu0 0
    %1316 = vmatpush2.bf16.msra.mxu0 0
    %1317 = vmatprep.mubr.bf16.mxu0 0
    %1318 = vmatmul.mubr.bf16.gmra.mxu0 %v1283
    %v1319 = vpop.f32.mrf.mxu0
    %v1320 = vadd.f32 %v1128, %v1319
    %v1321 = vpop.f32.mrf.mxu0
    %v1322 = vpop.f32.mrf.mxu0
    %v1323 = vpop.f32.mrf.mxu0
    %1324 = vdwg.mxu0
    %s1325 = scalar_lea.vmem [#allocation10], 6
    %1326 = vst [vmem:[%s1325] sm:$0x3] %v1320
    %v1327 = vld [vmem:[%s872] sm:$0x3]
    %v1328 = vpack.c.bf16 %v1327, %v1327
    %v1330 = vsel %vm479, %v1328, 0
    %1332 = vmatprep.subr.bf16.mxu0 0
    %1333 = vmatpush1.bf16.msra.mxu0 0
    %1334 = vmatprep.subr.bf16.mxu0 0
    %1335 = vmatpush1.bf16.msra.mxu0 0
    %1336 = vmatprep.subr.bf16.mxu0 0
    %1337 = vmatpush1.bf16.msra.mxu0 0
    %1338 = vmatprep.subr.bf16.mxu0 0
    %1339 = vmatpush1.bf16.msra.mxu0 0
    %1340 = vmatprep.subr.bf16.mxu0 0
    %1341 = vmatpush1.bf16.msra.mxu0 0
    %1342 = vmatprep.subr.bf16.mxu0 0
    %1343 = vmatpush1.bf16.msra.mxu0 0
    %1344 = vmatprep.subr.bf16.mxu0 0
    %1345 = vmatpush1.bf16.msra.mxu0 %v1139
    %1346 = vmatprep.subr.bf16.mxu0 0
    %1347 = vmatpush1.bf16.msra.mxu0 %v1138
    %1348 = vmatprep.subr.bf16.mxu0 0
    %1349 = vmatpush2.bf16.msra.mxu0 0
    %1350 = vmatprep.subr.bf16.mxu0 0
    %1351 = vmatpush2.bf16.msra.mxu0 0
    %1352 = vmatprep.subr.bf16.mxu0 0
    %1353 = vmatpush2.bf16.msra.mxu0 0
    %1354 = vmatprep.subr.bf16.mxu0 0
    %1355 = vmatpush2.bf16.msra.mxu0 0
    %1356 = vmatprep.subr.bf16.mxu0 0
    %1357 = vmatpush2.bf16.msra.mxu0 0
    %1358 = vmatprep.subr.bf16.mxu0 0
    %1359 = vmatpush2.bf16.msra.mxu0 0
    %1360 = vmatprep.subr.bf16.mxu0 0
    %1361 = vmatpush2.bf16.msra.mxu0 0
    %1362 = vmatprep.subr.bf16.mxu0 0
    %1363 = vmatpush2.bf16.msra.mxu0 0
    %1364 = vmatprep.mubr.bf16.mxu0 0
    %1365 = vmatmul.mubr.bf16.gmra.mxu0 %v1330
    %v1366 = vpop.f32.mrf.mxu0
    %v1367 = vadd.f32 %v1128, %v1366
    %v1368 = vpop.f32.mrf.mxu0
    %v1369 = vpop.f32.mrf.mxu0
    %v1370 = vpop.f32.mrf.mxu0
    %1371 = vdwg.mxu0
    %s1372 = scalar_lea.vmem [#allocation10], 8
    %1373 = vst [vmem:[%s1372] sm:$0x3] %v1367
    %v1374 = vld [vmem:[%s951] sm:$0x3]
    %v1375 = vpack.c.bf16 %v1374, %v1374
    %v1377 = vsel %vm479, %v1375, 0
    %1379 = vmatprep.subr.bf16.mxu0 0
    %1380 = vmatpush1.bf16.msra.mxu0 0
    %1381 = vmatprep.subr.bf16.mxu0 0
    %1382 = vmatpush1.bf16.msra.mxu0 0
    %1383 = vmatprep.subr.bf16.mxu0 0
    %1384 = vmatpush1.bf16.msra.mxu0 0
    %1385 = vmatprep.subr.bf16.mxu0 0
    %1386 = vmatpush1.bf16.msra.mxu0 0
    %1387 = vmatprep.subr.bf16.mxu0 0
    %1388 = vmatpush1.bf16.msra.mxu0 0
    %1389 = vmatprep.subr.bf16.mxu0 0
    %1390 = vmatpush1.bf16.msra.mxu0 0
    %1391 = vmatprep.subr.bf16.mxu0 0
    %1392 = vmatpush1.bf16.msra.mxu0 %v1139
    %1393 = vmatprep.subr.bf16.mxu0 0
    %1394 = vmatpush1.bf16.msra.mxu0 %v1138
    %1395 = vmatprep.subr.bf16.mxu0 0
    %1396 = vmatpush2.bf16.msra.mxu0 0
    %1397 = vmatprep.subr.bf16.mxu0 0
    %1398 = vmatpush2.bf16.msra.mxu0 0
    %1399 = vmatprep.subr.bf16.mxu0 0
    %1400 = vmatpush2.bf16.msra.mxu0 0
    %1401 = vmatprep.subr.bf16.mxu0 0
    %1402 = vmatpush2.bf16.msra.mxu0 0
    %1403 = vmatprep.subr.bf16.mxu0 0
    %1404 = vmatpush2.bf16.msra.mxu0 0
    %1405 = vmatprep.subr.bf16.mxu0 0
    %1406 = vmatpush2.bf16.msra.mxu0 0
    %1407 = vmatprep.subr.bf16.mxu0 0
    %1408 = vmatpush2.bf16.msra.mxu0 0
    %1409 = vmatprep.subr.bf16.mxu0 0
    %1410 = vmatpush2.bf16.msra.mxu0 0
    %1411 = vmatprep.mubr.bf16.mxu0 0
    %1412 = vmatmul.mubr.bf16.gmra.mxu0 %v1377
    %v1413 = vpop.f32.mrf.mxu0
    %v1414 = vadd.f32 %v1128, %v1413
    %v1415 = vpop.f32.mrf.mxu0
    %v1416 = vpop.f32.mrf.mxu0
    %v1417 = vpop.f32.mrf.mxu0
    %1418 = vdwg.mxu0
    %s1419 = scalar_lea.vmem [#allocation10], 10
    %1420 = vst [vmem:[%s1419] sm:$0x3] %v1414
    %v1421 = vld [vmem:[%s1030] sm:$0x3]
    %v1422 = vpack.c.bf16 %v1421, %v1421
    %v1424 = vsel %vm479, %v1422, 0
    %1426 = vmatprep.subr.bf16.mxu0 0
    %1427 = vmatpush1.bf16.msra.mxu0 0
    %1428 = vmatprep.subr.bf16.mxu0 0
    %1429 = vmatpush1.bf16.msra.mxu0 0
    %1430 = vmatprep.subr.bf16.mxu0 0
    %1431 = vmatpush1.bf16.msra.mxu0 0
    %1432 = vmatprep.subr.bf16.mxu0 0
    %1433 = vmatpush1.bf16.msra.mxu0 0
    %1434 = vmatprep.subr.bf16.mxu0 0
    %1435 = vmatpush1.bf16.msra.mxu0 0
    %1436 = vmatprep.subr.bf16.mxu0 0
    %1437 = vmatpush1.bf16.msra.mxu0 0
    %1438 = vmatprep.subr.bf16.mxu0 0
    %1439 = vmatpush1.bf16.msra.mxu0 %v1139
    %1440 = vmatprep.subr.bf16.mxu0 0
    %1441 = vmatpush1.bf16.msra.mxu0 %v1138
    %1442 = vmatprep.subr.bf16.mxu0 0
    %1443 = vmatpush2.bf16.msra.mxu0 0
    %1444 = vmatprep.subr.bf16.mxu0 0
    %1445 = vmatpush2.bf16.msra.mxu0 0
    %1446 = vmatprep.subr.bf16.mxu0 0
    %1447 = vmatpush2.bf16.msra.mxu0 0
    %1448 = vmatprep.subr.bf16.mxu0 0
    %1449 = vmatpush2.bf16.msra.mxu0 0
    %1450 = vmatprep.subr.bf16.mxu0 0
    %1451 = vmatpush2.bf16.msra.mxu0 0
    %1452 = vmatprep.subr.bf16.mxu0 0
    %1453 = vmatpush2.bf16.msra.mxu0 0
    %1454 = vmatprep.subr.bf16.mxu0 0
    %1455 = vmatpush2.bf16.msra.mxu0 0
    %1456 = vmatprep.subr.bf16.mxu0 0
    %1457 = vmatpush2.bf16.msra.mxu0 0
    %1458 = vmatprep.mubr.bf16.mxu0 0
    %1459 = vmatmul.mubr.bf16.gmra.mxu0 %v1424
    %v1460 = vpop.f32.mrf.mxu0
    %v1461 = vadd.f32 %v1128, %v1460
    %v1462 = vpop.f32.mrf.mxu0
    %v1463 = vpop.f32.mrf.mxu0
    %v1464 = vpop.f32.mrf.mxu0
    %1465 = vdwg.mxu0
    %s1466 = scalar_lea.vmem [#allocation10], 12
    %1467 = vst [vmem:[%s1466] sm:$0x3] %v1461
    %v1468 = vld [vmem:[%s1109] sm:$0x3]
    %v1469 = vpack.c.bf16 %v1468, %v1468
    %v1471 = vsel %vm479, %v1469, 0
    %1473 = vmatprep.subr.bf16.mxu0 0
    %1474 = vmatpush1.bf16.msra.mxu0 0
    %1475 = vmatprep.subr.bf16.mxu0 0
    %1476 = vmatpush1.bf16.msra.mxu0 0
    %1477 = vmatprep.subr.bf16.mxu0 0
    %1478 = vmatpush1.bf16.msra.mxu0 0
    %1479 = vmatprep.subr.bf16.mxu0 0
    %1480 = vmatpush1.bf16.msra.mxu0 0
    %1481 = vmatprep.subr.bf16.mxu0 0
    %1482 = vmatpush1.bf16.msra.mxu0 0
    %1483 = vmatprep.subr.bf16.mxu0 0
    %1484 = vmatpush1.bf16.msra.mxu0 0
    %1485 = vmatprep.subr.bf16.mxu0 0
    %1486 = vmatpush1.bf16.msra.mxu0 %v1139
    %1487 = vmatprep.subr.bf16.mxu0 0
    %1488 = vmatpush1.bf16.msra.mxu0 %v1138
    %1489 = vmatprep.subr.bf16.mxu0 0
    %1490 = vmatpush2.bf16.msra.mxu0 0
    %1491 = vmatprep.subr.bf16.mxu0 0
    %1492 = vmatpush2.bf16.msra.mxu0 0
    %1493 = vmatprep.subr.bf16.mxu0 0
    %1494 = vmatpush2.bf16.msra.mxu0 0
    %1495 = vmatprep.subr.bf16.mxu0 0
    %1496 = vmatpush2.bf16.msra.mxu0 0
    %1497 = vmatprep.subr.bf16.mxu0 0
    %1498 = vmatpush2.bf16.msra.mxu0 0
    %1499 = vmatprep.subr.bf16.mxu0 0
    %1500 = vmatpush2.bf16.msra.mxu0 0
    %1501 = vmatprep.subr.bf16.mxu0 0
    %1502 = vmatpush2.bf16.msra.mxu0 0
    %1503 = vmatprep.subr.bf16.mxu0 0
    %1504 = vmatpush2.bf16.msra.mxu0 0
    %1505 = vmatprep.mubr.bf16.mxu0 0
    %1506 = vmatmul.mubr.bf16.gmra.mxu0 %v1471
    %v1507 = vpop.f32.mrf.mxu0
    %v1508 = vadd.f32 %v1128, %v1507
    %v1509 = vpop.f32.mrf.mxu0
    %v1510 = vpop.f32.mrf.mxu0
    %v1511 = vpop.f32.mrf.mxu0
    %1512 = vdwg.mxu0
    %s1513 = scalar_lea.vmem [#allocation10], 14
    %1514 = vst [vmem:[%s1513] sm:$0x3] %v1508
    // Predicated region
    $region46: #{tpu_custom_call.1} parent=1 // pred_check
      _
    $region47: #{tpu_custom_call.1} parent=1 // pred_check_branch
      %1516 = sbr.rel (0) target = $region49
    $region48: #{tpu_custom_call.1} parent=1 // pred_region
      %s1518 = ssub.s32 256, 256
      %1519 = vsyncadd [#allocation6], %s1518
      %s1520 = sshll.u32 [#allocation10], 4
      %s1521 = int_to_ptr.vmem [resolvable:$true] %s1520
      %1526 = dma.vmem_to_hbm [thread:$0]  %s1521, 256, %s8, [#allocation6], 32, 32, 2
    $region49: #{tpu_custom_call.1} parent=1 // pred_fallthru
      _
    // Predicated region
    $region50: #{tpu_custom_call.1} parent=1 // pred_check
      _
    $region51: #{tpu_custom_call.1} parent=1 // pred_check_branch
      %1528 = sbr.rel (0) target = $region53
    $region52: #{tpu_custom_call.1} parent=1 // pred_region
      %s1530 = ssub.s32 32, 32
      %1531 = vsyncadd [#allocation12], %s1530
      %s1533 = sshll.u32 [#allocation11], 4
      %s1534 = int_to_ptr.vmem [resolvable:$true] %s1533
      %1536 = dma.vmem_to_hbm [thread:$0]  %s1534, 32, %s9, [#allocation12]
    $region53: #{tpu_custom_call.1} parent=1 // pred_fallthru
      _
    // Predicated region
    $region54: #{tpu_custom_call.1} parent=1 // pred_check
      _
    $region55: #{tpu_custom_call.1} parent=1 // pred_check_branch
      %1538 = sbr.rel (0) target = $region57
    $region56: #{tpu_custom_call.1} parent=1 // pred_region
      %s1540 = ssub.s32 32, 32
      %1541 = vsyncadd [#allocation12], %s1540
      %s1543 = sshll.u32 [#allocation13], 4
      %s1544 = int_to_ptr.vmem [resolvable:$true] %s1543
      %1546 = dma.vmem_to_hbm [thread:$0]  %s1544, 32, %s10, [#allocation12]
    $region57: #{tpu_custom_call.1} parent=1 // pred_fallthru
      _
    // Predicated region
    $region58: #{tpu_custom_call.1} parent=1 // pred_check
      _
    $region59: #{tpu_custom_call.1} parent=1 // pred_check_branch
      %1548 = sbr.rel (0) target = $region61
    $region60: #{tpu_custom_call.1} parent=1 // pred_region
      %1549 = dma.done [#allocation6], 256
    $region61: #{tpu_custom_call.1} parent=1 // pred_fallthru
      _
    // Predicated region
    $region62: #{tpu_custom_call.1} parent=1 // pred_check
      _
    $region63: #{tpu_custom_call.1} parent=1 // pred_check_branch
      %1551 = sbr.rel (0) target = $region65
    $region64: #{tpu_custom_call.1} parent=1 // pred_region
      %1552 = dma.done [#allocation12], 32
    $region65: #{tpu_custom_call.1} parent=1 // pred_fallthru
      _
    // Predicated region
    $region66: #{tpu_custom_call.1} parent=1 // pred_check
      _
    $region67: #{tpu_custom_call.1} parent=1 // pred_check_branch
      %1554 = sbr.rel (0) target = $region69
    $region68: #{tpu_custom_call.1} parent=1 // pred_region
      %1555 = dma.done [#allocation12], 32
    $region69: #{tpu_custom_call.1} parent=1 // pred_fallthru
      _
    %1556 = vsyncpa [#allocation5], 1
    %1557 = vsyncpa [#allocation8], 1
    %1558 = vsyncpa [#allocation6], 1
    %1559 = vsyncpa [#allocation12], 1

</llo_original>
